<compile_context>
chip_gen: v7x
topology: tpu7x:2x2x1
jax: 0.10.0
libtpu: 0.0.40
codegen_flags: <defaults>
</compile_context>

<pallas_src>
import functools

import jax
import jax.numpy as jnp
from jax.experimental import pallas as pl
from jax.experimental.pallas import tpu as pltpu

# ---- synthetic model dims (tiny stand-in for uncased_L-12_H-768_A-12) ----
B, L, H, V, F = 4, 16, 128, 256, 256
PAD_ID, CLS_ID, SEP_ID, MASK_ID = 0, 1, 2, 3
IGNORE = -100

N_SEQ = 2 * B          # left + right sequences stacked
N_TOK = N_SEQ * L      # 128 stacked tokens = matmul M dimension
N_SPAN = 4 * B         # l_head, l_tail, r_head, r_tail per batch row

assert F == V, "vecW packing (b1|bv stacked as rows of one slab) assumes F == V"


def _bf16_elementwise_ok():
    # v6e / v7x have bf16 VPU + EUP; v5e and earlier do not -> keep f32 there.
    try:
        kind = jax.devices()[0].device_kind.lower()
    except Exception:
        return False
    return ("v6" in kind) or ("v7" in kind)


_USE_BF16_ACT = _bf16_elementwise_ok()


def _layernorm(x, g, b, eps=1e-12):
    m = jnp.mean(x, axis=-1, keepdims=True)
    v = jnp.mean((x - m) ** 2, axis=-1, keepdims=True)
    return (x - m) * jax.lax.rsqrt(v + eps) * g + b


# --------------------------------------------------------------------------
# Fused Pallas kernel: synthetic BertForMaskedLM on stacked left|right tokens
# + per-side masked-LM loss + entity-span pooling + similarity + BCE loss.
# --------------------------------------------------------------------------
def mtb_kernel(tok_ref, spans_ref, y_ref, Wrow_ref, Wcol_ref, vecH_ref,
               vecW_ref, loss_ref, *, use_bf16_act):
    ids = tok_ref[:, 0:1]                                           # (N_TOK, 1) int32
    labels = tok_ref[:, 1:2]                                        # (N_TOK, 1) int32
    col_v = jax.lax.broadcasted_iota(jnp.int32, (N_TOK, V), 1)      # (N_TOK, V)

    # ---- static slices of the packed parameter slabs --------------------
    E = Wrow_ref[0:V, :]                 # (V, H)  bf16
    W2 = Wrow_ref[V:V + F, :]            # (F, H)  bf16
    W1 = Wcol_ref[:, 0:F]                # (H, F)  bf16
    Wv = Wcol_ref[:, F:F + V]            # (H, V)  bf16
    P = vecH_ref[0:L, :]                 # (L, H)  f32
    g1 = vecH_ref[L + 0:L + 1, :]
    be1 = vecH_ref[L + 1:L + 2, :]
    g2 = vecH_ref[L + 2:L + 3, :]
    be2 = vecH_ref[L + 3:L + 4, :]
    b2 = vecH_ref[L + 4:L + 5, :]
    b1 = vecW_ref[0:1, :]                # (1, F)  f32
    bv = vecW_ref[1:2, :]                # (1, V)  f32

    # ---- embedding lookup as one-hot @ E on the MXU (bf16 operands, f32 acc)
    onehot = (col_v == ids).astype(jnp.bfloat16)
    emb = jnp.dot(onehot, E, preferred_element_type=jnp.float32)    # (N_TOK, H) f32
    # positional embedding: layout-free broadcast add (L is a multiple of 8)
    emb = (emb.reshape(N_SEQ, L, H) + P[None, :, :]).reshape(N_TOK, H)
    h = _layernorm(emb, g1, be1)

    # ---- FFN block with residual + LayerNorm
    ffd = jnp.dot(h.astype(jnp.bfloat16), W1, preferred_element_type=jnp.float32)
    # TODO(synk): real HF BERT uses exact (erf) GELU; tanh approximation kept.
    if use_bf16_act:
        # bf16 GELU on v6e/v7x (bf16 VPU/EUP); feeds the bf16 W2 matmul directly.
        ff = jax.nn.gelu(ffd.astype(jnp.bfloat16) + b1.astype(jnp.bfloat16),
                         approximate=True)
    else:
        ff = jax.nn.gelu(ffd + b1, approximate=True).astype(jnp.bfloat16)
    ff2 = jnp.dot(ff, W2, preferred_element_type=jnp.float32) + b2
    h2 = _layernorm(h + ff2, g2, be2)                               # (N_TOK, H) f32

    # ---- MLM head + per-side masked-LM cross-entropy (ignore_index=-100, mean)
    logits = jnp.dot(h2.astype(jnp.bfloat16), Wv,
                     preferred_element_type=jnp.float32) + bv       # (N_TOK, V)
    m = jnp.max(logits, axis=-1, keepdims=True)
    lse = jnp.log(jnp.sum(jnp.exp(logits - m), axis=-1, keepdims=True)) + m
    picked = jnp.sum(jnp.where(col_v == labels, logits, 0.0),
                     axis=-1, keepdims=True)                        # (N_TOK, 1)
    valid = (labels != IGNORE).astype(jnp.float32)
    nll = (lse - picked) * valid                                    # (N_TOK, 1)

    half = N_TOK // 2                                               # sublane-aligned
    # TODO(synk): max(count, 1) guard makes a side with zero masked tokens
    # contribute 0, whereas torch CrossEntropyLoss(mean, ignore=-100) gives NaN.
    l_mlm = jnp.sum(nll[:half]) / jnp.maximum(jnp.sum(valid[:half]), 1.0)
    r_mlm = jnp.sum(nll[half:]) / jnp.maximum(jnp.sum(valid[half:]), 1.0)
    loss_ref[0] = l_mlm + r_mlm

    # ---- entity-span mean pooling as one small matmul on the MXU
    # row layout: [l_head(b=0..B-1), l_tail(...), r_head(...), r_tail(...)]
    col_t = jax.lax.broadcasted_iota(jnp.int32, (N_SPAN, N_TOK), 1)
    ss = spans_ref[:, 0:1]                                          # (N_SPAN, 1) int32
    se = spans_ref[:, 1:2]                                          # (N_SPAN, 1) int32
    span_mask = ((col_t >= ss) & (col_t < se)).astype(jnp.float32)
    cnt = jnp.maximum(jnp.sum(span_mask, axis=-1, keepdims=True), 1.0)
    span_w = span_mask / cnt                       # fold 1/cnt into the mask
    means = jnp.dot(span_w, h2, preferred_element_type=jnp.float32)  # (N_SPAN, H)

    l_h = means[0 * B:1 * B]
    l_t = means[1 * B:2 * B]
    r_h = means[2 * B:3 * B]
    r_t = means[3 * B:4 * B]
    # similarity = sum(cat(l_h,l_t) * cat(r_h,r_t)) = <l_h,r_h> + <l_t,r_t>
    sim = jnp.sum(l_h * r_h + l_t * r_t, axis=-1, keepdims=True)     # (B, 1)

    y = y_ref[...]                                                   # (B, 1) f32
    # Numerically stable BCE-with-logits, mean reduction (nn.BCEWithLogitsLoss).
    per = jnp.maximum(sim, 0.0) - sim * y + jnp.log(1.0 + jnp.exp(-jnp.abs(sim)))
    loss_ref[1] = jnp.mean(per)


# --------------------------------------------------------------------------
# Plain-JAX glue: mask_tokens (random 80/10/10 MLM masking) and MTB.forward.
# --------------------------------------------------------------------------
def mask_tokens_jax(key, inputs, not_mask_pos):
    labels = inputs
    prob = jnp.full(inputs.shape, 0.15, jnp.float32)
    special = (inputs == CLS_ID) | (inputs == SEP_ID)
    prob = jnp.where(special, 0.0, prob)
    prob = jnp.where(inputs == PAD_ID, 0.0, prob)
    k1, k2, k3, k4 = jax.random.split(key, 4)
    masked = jax.random.bernoulli(k1, prob) & (~not_mask_pos.astype(bool))
    labels = jnp.where(masked, labels, IGNORE)
    replaced = jax.random.bernoulli(k2, 0.8, inputs.shape) & masked
    inputs = jnp.where(replaced, MASK_ID, inputs)
    rand_sel = jax.random.bernoulli(k3, 0.5, inputs.shape) & masked & (~replaced)
    rand_words = jax.random.randint(k4, inputs.shape, 0, V, dtype=inputs.dtype)
    inputs = jnp.where(rand_sel, rand_words, inputs)
    return inputs, labels


def mtb_forward(params, key,
                l_input, l_mask, l_ph, l_pt, l_ph_l, l_pt_l,
                r_input, r_mask, r_ph, r_pt, r_ph_l, r_pt_l, label):
    # TODO(synk): l_mask / r_mask (attention masks) are unused because the
    # synthetic stand-in encoder has no self-attention layer.
    indice = jnp.arange(B)
    l_not_mask = (jnp.zeros((B, L), jnp.int32)
                  .at[indice, l_ph].set(1).at[indice, l_pt].set(1))
    r_not_mask = (jnp.zeros((B, L), jnp.int32)
                  .at[indice, r_ph].set(1).at[indice, r_pt].set(1))
    kl, kr = jax.random.split(key)
    # TODO(synk): masking could move in-kernel via pltpu.prng_seed/random_bits,
    # but that changes the RNG stream vs jax.random, so it stays in JAX glue.
    m_l_input, m_l_labels = mask_tokens_jax(kl, l_input, l_not_mask)
    m_r_input, m_r_labels = mask_tokens_jax(kr, r_input, r_not_mask)

    # Packed (N_TOK, 2): col 0 = masked ids, col 1 = MLM labels.
    # Stacked-token row layout: side*B*L + b*L + pos (left first, then right).
    ids = jnp.concatenate([m_l_input.reshape(-1), m_r_input.reshape(-1)])
    labels = jnp.concatenate([m_l_labels.reshape(-1), m_r_labels.reshape(-1)])
    tok = jnp.stack([ids, labels], axis=1).astype(jnp.int32)

    # Packed (N_SPAN, 2) span [start, end) in stacked-token coordinates
    # (row layout: l_head, l_tail, r_head, r_tail).
    off_l = indice * L
    off_r = B * L + indice * L
    ss = jnp.concatenate([l_ph + off_l, l_pt + off_l, r_ph + off_r, r_pt + off_r])
    se = jnp.concatenate([l_ph_l + off_l, l_pt_l + off_l,
                          r_ph_l + off_r, r_pt_l + off_r])
    spans = jnp.stack([ss, se], axis=1).astype(jnp.int32)

    y = label.reshape(B, 1).astype(jnp.float32)

    vmem = pl.BlockSpec(memory_space=pltpu.MemorySpace.VMEM)
    smem = pl.BlockSpec(memory_space=pltpu.MemorySpace.SMEM)
    losses = pl.pallas_call(
        functools.partial(mtb_kernel, use_bf16_act=_USE_BF16_ACT),
        out_shape=jax.ShapeDtypeStruct((2,), jnp.float32),
        in_specs=[vmem] * 7,
        out_specs=smem,                    # two scalar losses in SMEM (no padded tiles)
    )(tok, spans, y,
      params["Wrow"], params["Wcol"], params["vecH"], params["vecW"])
    return losses[0], losses[1]


def init_params(key):
    ks = jax.random.split(key, 8)

    def nrm(k, shape, scale=0.02):
        return scale * jax.random.normal(k, shape, jnp.float32)

    E = nrm(ks[0], (V, H))
    P = nrm(ks[1], (L, H))
    W1 = nrm(ks[2], (H, F))
    W2 = nrm(ks[3], (F, H))
    Wv = nrm(ks[4], (H, V))
    g1 = jnp.ones((1, H), jnp.float32)
    be1 = jnp.zeros((1, H), jnp.float32)
    g2 = jnp.ones((1, H), jnp.float32)
    be2 = jnp.zeros((1, H), jnp.float32)
    b1 = jnp.zeros((1, F), jnp.float32)
    b2 = jnp.zeros((1, H), jnp.float32)
    bv = jnp.zeros((1, V), jnp.float32)

    # Pack parameters into a few contiguous slabs once at init so the kernel
    # issues ~4 weight DMAs instead of 13 (each tiny array would otherwise get
    # its own descriptor + padded (8,128) VMEM tile).
    return dict(
        # MXU operands stored in bf16 (f32 accumulation inside the kernel).
        Wrow=jnp.concatenate([E, W2], axis=0).astype(jnp.bfloat16),   # (V+F, H)
        Wcol=jnp.concatenate([W1, Wv], axis=1).astype(jnp.bfloat16),  # (H, F+V)
        vecH=jnp.concatenate([P, g1, be1, g2, be2, b2], axis=0),      # (L+5, H) f32
        vecW=jnp.concatenate([b1, bv], axis=0),                       # (2, F=V) f32
    )


if __name__ == "__main__":
    key = jax.random.PRNGKey(0)
    kp, kd, km = jax.random.split(key, 3)
    params = init_params(kp)

    kl, kr = jax.random.split(kd)
    l_input = jax.random.randint(kl, (B, L), 5, V, dtype=jnp.int32)
    r_input = jax.random.randint(kr, (B, L), 5, V, dtype=jnp.int32)
    l_input = l_input.at[:, 0].set(CLS_ID).at[:, L - 1].set(SEP_ID)
    r_input = r_input.at[:, 0].set(CLS_ID).at[:, L - 1].set(SEP_ID)
    l_mask = jnp.ones((B, L), jnp.int32)
    r_mask = jnp.ones((B, L), jnp.int32)

    l_ph = jnp.array([2, 3, 1, 4], jnp.int32)
    l_ph_l = jnp.array([5, 6, 4, 7], jnp.int32)
    l_pt = jnp.array([8, 9, 10, 9], jnp.int32)
    l_pt_l = jnp.array([11, 12, 14, 12], jnp.int32)
    r_ph = jnp.array([1, 4, 2, 3], jnp.int32)
    r_ph_l = jnp.array([4, 7, 6, 5], jnp.int32)
    r_pt = jnp.array([9, 10, 8, 11], jnp.int32)
    r_pt_l = jnp.array([12, 14, 12, 15], jnp.int32)
    label = jnp.array([1.0, 0.0, 1.0, 0.0], jnp.float32)

    fwd = jax.jit(mtb_forward)
    m_loss, r_loss = fwd(params, km,
                         l_input, l_mask, l_ph, l_pt, l_ph_l, l_pt_l,
                         r_input, r_mask, r_ph, r_pt, r_ph_l, r_pt_l,
                         label)
    jax.block_until_ready((m_loss, r_loss))
    print("KERNEL_OK")
</pallas_src>

<mosaic_0001>
module attributes {stable_mosaic.version = 11 : i64} {
  func.func @mtb_kernel(%arg0: memref<128x2xi32, #tpu.memory_space<vmem>>, %arg1: memref<16x2xi32, #tpu.memory_space<vmem>>, %arg2: memref<4x1xf32, #tpu.memory_space<vmem>>, %arg3: memref<512x128xbf16, #tpu.memory_space<vmem>>, %arg4: memref<128x512xbf16, #tpu.memory_space<vmem>>, %arg5: memref<21x128xf32, #tpu.memory_space<vmem>>, %arg6: memref<2x256xf32, #tpu.memory_space<vmem>>, %arg7: memref<2xf32, #tpu.memory_space<smem>>) attributes {dimension_semantics = [], scalar_prefetch = 0 : i64, scratch_operands = 0 : i64, tpu.core_type = #tpu.core_type<tc>} {
    %c0 = arith.constant 0 : index
    %c0_0 = arith.constant 0 : index
    %0 = vector.load %arg0[%c0, %c0_0] : memref<128x2xi32, #tpu.memory_space<vmem>>, vector<128x1xi32>
    %c0_1 = arith.constant 0 : index
    %c1 = arith.constant 1 : index
    %1 = vector.load %arg0[%c0_1, %c1] : memref<128x2xi32, #tpu.memory_space<vmem>>, vector<128x1xi32>
    %2 = tpu.iota {dimensions = array<i32: 1>} : vector<128x256xi32>
    %c0_2 = arith.constant 0 : index
    %c0_3 = arith.constant 0 : index
    %3 = vector.load %arg3[%c0_2, %c0_3] : memref<512x128xbf16, #tpu.memory_space<vmem>>, vector<256x128xbf16>
    %c256 = arith.constant 256 : index
    %c0_4 = arith.constant 0 : index
    %4 = vector.load %arg3[%c256, %c0_4] : memref<512x128xbf16, #tpu.memory_space<vmem>>, vector<256x128xbf16>
    %c0_5 = arith.constant 0 : index
    %c0_6 = arith.constant 0 : index
    %5 = vector.load %arg4[%c0_5, %c0_6] : memref<128x512xbf16, #tpu.memory_space<vmem>>, vector<128x256xbf16>
    %c0_7 = arith.constant 0 : index
    %c256_8 = arith.constant 256 : index
    %6 = vector.load %arg4[%c0_7, %c256_8] : memref<128x512xbf16, #tpu.memory_space<vmem>>, vector<128x256xbf16>
    %c0_9 = arith.constant 0 : index
    %c0_10 = arith.constant 0 : index
    %7 = vector.load %arg5[%c0_9, %c0_10] : memref<21x128xf32, #tpu.memory_space<vmem>>, vector<16x128xf32>
    %c16 = arith.constant 16 : index
    %c0_11 = arith.constant 0 : index
    %8 = vector.load %arg5[%c16, %c0_11] : memref<21x128xf32, #tpu.memory_space<vmem>>, vector<1x128xf32>
    %c17 = arith.constant 17 : index
    %c0_12 = arith.constant 0 : index
    %9 = vector.load %arg5[%c17, %c0_12] : memref<21x128xf32, #tpu.memory_space<vmem>>, vector<1x128xf32>
    %c18 = arith.constant 18 : index
    %c0_13 = arith.constant 0 : index
    %10 = vector.load %arg5[%c18, %c0_13] : memref<21x128xf32, #tpu.memory_space<vmem>>, vector<1x128xf32>
    %c19 = arith.constant 19 : index
    %c0_14 = arith.constant 0 : index
    %11 = vector.load %arg5[%c19, %c0_14] : memref<21x128xf32, #tpu.memory_space<vmem>>, vector<1x128xf32>
    %c20 = arith.constant 20 : index
    %c0_15 = arith.constant 0 : index
    %12 = vector.load %arg5[%c20, %c0_15] : memref<21x128xf32, #tpu.memory_space<vmem>>, vector<1x128xf32>
    %c0_16 = arith.constant 0 : index
    %c0_17 = arith.constant 0 : index
    %13 = vector.load %arg6[%c0_16, %c0_17] : memref<2x256xf32, #tpu.memory_space<vmem>>, vector<1x256xf32>
    %c1_18 = arith.constant 1 : index
    %c0_19 = arith.constant 0 : index
    %14 = vector.load %arg6[%c1_18, %c0_19] : memref<2x256xf32, #tpu.memory_space<vmem>>, vector<1x256xf32>
    %15 = vector.broadcast %0 : vector<128x1xi32> to vector<128x256xi32>
    %16 = arith.cmpi eq, %2, %15 : vector<128x256xi32>
    %17 = arith.extui %16 : vector<128x256xi1> to vector<128x256xi32>
    %18 = arith.sitofp %17 : vector<128x256xi32> to vector<128x256xf32>
    %19 = arith.truncf %18 : vector<128x256xf32> to vector<128x256xbf16>
    %cst = arith.constant dense<0.000000e+00> : vector<128x128xf32>
    %20 = tpu.matmul %19, %3, %cst {dimension_numbers = #tpu.dot_dimension_numbers<[1], [0], [0], [1], [0, 0, 1, 1], [], []>} : vector<128x256xbf16>, vector<256x128xbf16>, vector<128x128xf32> -> vector<128x128xf32>
    %21 = vector.shape_cast %20 : vector<128x128xf32> to vector<8x16x128xf32>
    %22 = vector.shape_cast %7 : vector<16x128xf32> to vector<1x16x128xf32>
    %23 = vector.broadcast %22 : vector<1x16x128xf32> to vector<8x16x128xf32>
    %24 = arith.addf %21, %23 : vector<8x16x128xf32>
    %25 = vector.shape_cast %24 : vector<8x16x128xf32> to vector<128x128xf32>
    %cst_20 = arith.constant dense<0.000000e+00> : vector<128xf32>
    %26 = vector.multi_reduction <add>, %25, %cst_20 [1] : vector<128x128xf32> to vector<128xf32>
    %27 = vector.shape_cast %26 : vector<128xf32> to vector<128x1xf32>
    %cst_21 = arith.constant 1.280000e+02 : f32
    %28 = vector.broadcast %cst_21 : f32 to vector<128x1xf32>
    %29 = arith.divf %27, %28 : vector<128x1xf32>
    %30 = vector.broadcast %29 : vector<128x1xf32> to vector<128x128xf32>
    %31 = arith.subf %25, %30 : vector<128x128xf32>
    %32 = arith.mulf %31, %31 : vector<128x128xf32>
    %cst_22 = arith.constant dense<0.000000e+00> : vector<128xf32>
    %33 = vector.multi_reduction <add>, %32, %cst_22 [1] : vector<128x128xf32> to vector<128xf32>
    %34 = vector.shape_cast %33 : vector<128xf32> to vector<128x1xf32>
    %cst_23 = arith.constant 1.280000e+02 : f32
    %35 = vector.broadcast %cst_23 : f32 to vector<128x1xf32>
    %36 = arith.divf %34, %35 : vector<128x1xf32>
    %37 = vector.broadcast %29 : vector<128x1xf32> to vector<128x128xf32>
    %38 = arith.subf %25, %37 : vector<128x128xf32>
    %cst_24 = arith.constant 9.99999996E-13 : f32
    %39 = vector.broadcast %cst_24 : f32 to vector<128x1xf32>
    %40 = arith.addf %36, %39 : vector<128x1xf32>
    %41 = math.rsqrt %40 : vector<128x1xf32>
    %42 = vector.broadcast %41 : vector<128x1xf32> to vector<128x128xf32>
    %43 = arith.mulf %38, %42 : vector<128x128xf32>
    %44 = vector.broadcast %8 : vector<1x128xf32> to vector<128x128xf32>
    %45 = arith.mulf %43, %44 : vector<128x128xf32>
    %46 = vector.broadcast %9 : vector<1x128xf32> to vector<128x128xf32>
    %47 = arith.addf %45, %46 : vector<128x128xf32>
    %48 = arith.truncf %47 : vector<128x128xf32> to vector<128x128xbf16>
    %cst_25 = arith.constant dense<0.000000e+00> : vector<128x256xf32>
    %49 = tpu.matmul %48, %5, %cst_25 {dimension_numbers = #tpu.dot_dimension_numbers<[1], [0], [0], [1], [0, 0, 1, 1], [], []>} : vector<128x128xbf16>, vector<128x256xbf16>, vector<128x256xf32> -> vector<128x256xf32>
    %50 = vector.broadcast %13 : vector<1x256xf32> to vector<128x256xf32>
    %51 = arith.addf %49, %50 : vector<128x256xf32>
    %52 = arith.mulf %51, %51 : vector<128x256xf32>
    %53 = arith.mulf %51, %52 : vector<128x256xf32>
    %cst_26 = arith.constant 4.471500e-02 : f32
    %54 = vector.broadcast %cst_26 : f32 to vector<128x256xf32>
    %55 = arith.mulf %54, %53 : vector<128x256xf32>
    %56 = arith.addf %51, %55 : vector<128x256xf32>
    %cst_27 = arith.constant 0.797884583 : f32
    %57 = vector.broadcast %cst_27 : f32 to vector<128x256xf32>
    %58 = arith.mulf %57, %56 : vector<128x256xf32>
    %59 = math.tanh %58 : vector<128x256xf32>
    %cst_28 = arith.constant 1.000000e+00 : f32
    %60 = vector.broadcast %cst_28 : f32 to vector<128x256xf32>
    %61 = arith.addf %60, %59 : vector<128x256xf32>
    %cst_29 = arith.constant 5.000000e-01 : f32
    %62 = vector.broadcast %cst_29 : f32 to vector<128x256xf32>
    %63 = arith.mulf %62, %61 : vector<128x256xf32>
    %64 = arith.mulf %51, %63 : vector<128x256xf32>
    %65 = arith.truncf %64 : vector<128x256xf32> to vector<128x256xbf16>
    %cst_30 = arith.constant dense<0.000000e+00> : vector<128x128xf32>
    %66 = tpu.matmul %65, %4, %cst_30 {dimension_numbers = #tpu.dot_dimension_numbers<[1], [0], [0], [1], [0, 0, 1, 1], [], []>} : vector<128x256xbf16>, vector<256x128xbf16>, vector<128x128xf32> -> vector<128x128xf32>
    %67 = vector.broadcast %12 : vector<1x128xf32> to vector<128x128xf32>
    %68 = arith.addf %66, %67 : vector<128x128xf32>
    %69 = arith.addf %47, %68 : vector<128x128xf32>
    %cst_31 = arith.constant dense<0.000000e+00> : vector<128xf32>
    %70 = vector.multi_reduction <add>, %69, %cst_31 [1] : vector<128x128xf32> to vector<128xf32>
    %71 = vector.shape_cast %70 : vector<128xf32> to vector<128x1xf32>
    %cst_32 = arith.constant 1.280000e+02 : f32
    %72 = vector.broadcast %cst_32 : f32 to vector<128x1xf32>
    %73 = arith.divf %71, %72 : vector<128x1xf32>
    %74 = vector.broadcast %73 : vector<128x1xf32> to vector<128x128xf32>
    %75 = arith.subf %69, %74 : vector<128x128xf32>
    %76 = arith.mulf %75, %75 : vector<128x128xf32>
    %cst_33 = arith.constant dense<0.000000e+00> : vector<128xf32>
    %77 = vector.multi_reduction <add>, %76, %cst_33 [1] : vector<128x128xf32> to vector<128xf32>
    %78 = vector.shape_cast %77 : vector<128xf32> to vector<128x1xf32>
    %cst_34 = arith.constant 1.280000e+02 : f32
    %79 = vector.broadcast %cst_34 : f32 to vector<128x1xf32>
    %80 = arith.divf %78, %79 : vector<128x1xf32>
    %81 = vector.broadcast %73 : vector<128x1xf32> to vector<128x128xf32>
    %82 = arith.subf %69, %81 : vector<128x128xf32>
    %cst_35 = arith.constant 9.99999996E-13 : f32
    %83 = vector.broadcast %cst_35 : f32 to vector<128x1xf32>
    %84 = arith.addf %80, %83 : vector<128x1xf32>
    %85 = math.rsqrt %84 : vector<128x1xf32>
    %86 = vector.broadcast %85 : vector<128x1xf32> to vector<128x128xf32>
    %87 = arith.mulf %82, %86 : vector<128x128xf32>
    %88 = vector.broadcast %10 : vector<1x128xf32> to vector<128x128xf32>
    %89 = arith.mulf %87, %88 : vector<128x128xf32>
    %90 = vector.broadcast %11 : vector<1x128xf32> to vector<128x128xf32>
    %91 = arith.addf %89, %90 : vector<128x128xf32>
    %92 = arith.truncf %91 : vector<128x128xf32> to vector<128x128xbf16>
    %cst_36 = arith.constant dense<0.000000e+00> : vector<128x256xf32>
    %93 = tpu.matmul %92, %6, %cst_36 {dimension_numbers = #tpu.dot_dimension_numbers<[1], [0], [0], [1], [0, 0, 1, 1], [], []>} : vector<128x128xbf16>, vector<128x256xbf16>, vector<128x256xf32> -> vector<128x256xf32>
    %94 = vector.broadcast %14 : vector<1x256xf32> to vector<128x256xf32>
    %95 = arith.addf %93, %94 : vector<128x256xf32>
    %cst_37 = arith.constant dense<0xFF800000> : vector<128xf32>
    %96 = vector.multi_reduction <maximumf>, %95, %cst_37 [1] : vector<128x256xf32> to vector<128xf32>
    %97 = vector.shape_cast %96 : vector<128xf32> to vector<128x1xf32>
    %98 = vector.broadcast %97 : vector<128x1xf32> to vector<128x256xf32>
    %99 = arith.subf %95, %98 : vector<128x256xf32>
    %100 = math.exp %99 : vector<128x256xf32>
    %cst_38 = arith.constant dense<0.000000e+00> : vector<128xf32>
    %101 = vector.multi_reduction <add>, %100, %cst_38 [1] : vector<128x256xf32> to vector<128xf32>
    %102 = vector.shape_cast %101 : vector<128xf32> to vector<128x1xf32>
    %103 = math.log %102 : vector<128x1xf32>
    %104 = arith.addf %103, %97 : vector<128x1xf32>
    %105 = vector.broadcast %1 : vector<128x1xi32> to vector<128x256xi32>
    %106 = arith.cmpi eq, %2, %105 : vector<128x256xi32>
    %cst_39 = arith.constant 0.000000e+00 : f32
    %107 = vector.broadcast %cst_39 : f32 to vector<128x256xf32>
    %108 = arith.select %106, %95, %107 : vector<128x256xi1>, vector<128x256xf32>
    %cst_40 = arith.constant dense<0.000000e+00> : vector<128xf32>
    %109 = vector.multi_reduction <add>, %108, %cst_40 [1] : vector<128x256xf32> to vector<128xf32>
    %110 = vector.shape_cast %109 : vector<128xf32> to vector<128x1xf32>
    %c-100_i32 = arith.constant -100 : i32
    %111 = vector.broadcast %c-100_i32 : i32 to vector<128x1xi32>
    %112 = arith.cmpi ne, %1, %111 : vector<128x1xi32>
    %113 = arith.extui %112 : vector<128x1xi1> to vector<128x1xi32>
    %114 = arith.sitofp %113 : vector<128x1xi32> to vector<128x1xf32>
    %115 = arith.subf %104, %110 : vector<128x1xf32>
    %116 = arith.mulf %115, %114 : vector<128x1xf32>
    %117 = vector.extract_strided_slice %116 {offsets = [0, 0], sizes = [64, 1], strides = [1, 1]} : vector<128x1xf32> to vector<64x1xf32>
    %118 = vector.shape_cast %117 : vector<64x1xf32> to vector<1x64x1xf32>
    %cst_41 = arith.constant dense<0.000000e+00> : vector<1xf32>
    %119 = vector.multi_reduction <add>, %118, %cst_41 [1, 2] : vector<1x64x1xf32> to vector<1xf32>
    %120 = vector.shape_cast %119 : vector<1xf32> to vector<1x1x1xf32>
    %121 = vector.extract %120[0, 0, 0] : f32 from vector<1x1x1xf32>
    %122 = vector.extract_strided_slice %114 {offsets = [0, 0], sizes = [64, 1], strides = [1, 1]} : vector<128x1xf32> to vector<64x1xf32>
    %123 = vector.shape_cast %122 : vector<64x1xf32> to vector<1x64x1xf32>
    %cst_42 = arith.constant dense<0.000000e+00> : vector<1xf32>
    %124 = vector.multi_reduction <add>, %123, %cst_42 [1, 2] : vector<1x64x1xf32> to vector<1xf32>
    %125 = vector.shape_cast %124 : vector<1xf32> to vector<1x1x1xf32>
    %126 = vector.extract %125[0, 0, 0] : f32 from vector<1x1x1xf32>
    %cst_43 = arith.constant 1.000000e+00 : f32
    %127 = arith.maximumf %126, %cst_43 : f32
    %128 = arith.divf %121, %127 : f32
    %129 = vector.extract_strided_slice %116 {offsets = [64, 0], sizes = [64, 1], strides = [1, 1]} : vector<128x1xf32> to vector<64x1xf32>
    %130 = vector.shape_cast %129 : vector<64x1xf32> to vector<1x64x1xf32>
    %cst_44 = arith.constant dense<0.000000e+00> : vector<1xf32>
    %131 = vector.multi_reduction <add>, %130, %cst_44 [1, 2] : vector<1x64x1xf32> to vector<1xf32>
    %132 = vector.shape_cast %131 : vector<1xf32> to vector<1x1x1xf32>
    %133 = vector.extract %132[0, 0, 0] : f32 from vector<1x1x1xf32>
    %134 = vector.extract_strided_slice %114 {offsets = [64, 0], sizes = [64, 1], strides = [1, 1]} : vector<128x1xf32> to vector<64x1xf32>
    %135 = vector.shape_cast %134 : vector<64x1xf32> to vector<1x64x1xf32>
    %cst_45 = arith.constant dense<0.000000e+00> : vector<1xf32>
    %136 = vector.multi_reduction <add>, %135, %cst_45 [1, 2] : vector<1x64x1xf32> to vector<1xf32>
    %137 = vector.shape_cast %136 : vector<1xf32> to vector<1x1x1xf32>
    %138 = vector.extract %137[0, 0, 0] : f32 from vector<1x1x1xf32>
    %cst_46 = arith.constant 1.000000e+00 : f32
    %139 = arith.maximumf %138, %cst_46 : f32
    %140 = arith.divf %133, %139 : f32
    %141 = arith.addf %128, %140 : f32
    %c0_47 = arith.constant 0 : index
    %142 = memref.load %arg7[%c0_47] : memref<2xf32, #tpu.memory_space<smem>>
    memref.store %141, %arg7[%c0_47] : memref<2xf32, #tpu.memory_space<smem>>
    %143 = tpu.iota {dimensions = array<i32: 1>} : vector<16x128xi32>
    %c0_48 = arith.constant 0 : index
    %c0_49 = arith.constant 0 : index
    %144 = vector.load %arg1[%c0_48, %c0_49] : memref<16x2xi32, #tpu.memory_space<vmem>>, vector<16x1xi32>
    %c0_50 = arith.constant 0 : index
    %c1_51 = arith.constant 1 : index
    %145 = vector.load %arg1[%c0_50, %c1_51] : memref<16x2xi32, #tpu.memory_space<vmem>>, vector<16x1xi32>
    %146 = vector.broadcast %144 : vector<16x1xi32> to vector<16x128xi32>
    %147 = arith.cmpi sge, %143, %146 : vector<16x128xi32>
    %148 = vector.broadcast %145 : vector<16x1xi32> to vector<16x128xi32>
    %149 = arith.cmpi slt, %143, %148 : vector<16x128xi32>
    %150 = arith.andi %147, %149 : vector<16x128xi1>
    %151 = arith.extui %150 : vector<16x128xi1> to vector<16x128xi32>
    %152 = arith.sitofp %151 : vector<16x128xi32> to vector<16x128xf32>
    %cst_52 = arith.constant dense<0.000000e+00> : vector<16xf32>
    %153 = vector.multi_reduction <add>, %152, %cst_52 [1] : vector<16x128xf32> to vector<16xf32>
    %154 = vector.shape_cast %153 : vector<16xf32> to vector<16x1xf32>
    %cst_53 = arith.constant 1.000000e+00 : f32
    %155 = vector.broadcast %cst_53 : f32 to vector<16x1xf32>
    %156 = arith.maximumf %154, %155 : vector<16x1xf32>
    %157 = vector.broadcast %156 : vector<16x1xf32> to vector<16x128xf32>
    %158 = arith.divf %152, %157 : vector<16x128xf32>
    %cst_54 = arith.constant dense<0.000000e+00> : vector<16x128xf32>
    %159 = tpu.matmul %158, %91, %cst_54 {dimension_numbers = #tpu.dot_dimension_numbers<[1], [0], [0], [1], [0, 0, 1, 1], [], []>} : vector<16x128xf32>, vector<128x128xf32>, vector<16x128xf32> -> vector<16x128xf32>
    %160 = vector.extract_strided_slice %159 {offsets = [0, 0], sizes = [4, 128], strides = [1, 1]} : vector<16x128xf32> to vector<4x128xf32>
    %161 = vector.extract_strided_slice %159 {offsets = [4, 0], sizes = [4, 128], strides = [1, 1]} : vector<16x128xf32> to vector<4x128xf32>
    %162 = vector.extract_strided_slice %159 {offsets = [8, 0], sizes = [4, 128], strides = [1, 1]} : vector<16x128xf32> to vector<4x128xf32>
    %163 = vector.extract_strided_slice %159 {offsets = [12, 0], sizes = [4, 128], strides = [1, 1]} : vector<16x128xf32> to vector<4x128xf32>
    %164 = arith.mulf %160, %162 : vector<4x128xf32>
    %165 = arith.mulf %161, %163 : vector<4x128xf32>
    %166 = arith.addf %164, %165 : vector<4x128xf32>
    %cst_55 = arith.constant dense<0.000000e+00> : vector<4xf32>
    %167 = vector.multi_reduction <add>, %166, %cst_55 [1] : vector<4x128xf32> to vector<4xf32>
    %168 = vector.shape_cast %167 : vector<4xf32> to vector<4x1xf32>
    %c0_56 = arith.constant 0 : index
    %c0_57 = arith.constant 0 : index
    %169 = vector.load %arg2[%c0_56, %c0_57] : memref<4x1xf32, #tpu.memory_space<vmem>>, vector<4x1xf32>
    %cst_58 = arith.constant 0.000000e+00 : f32
    %170 = vector.broadcast %cst_58 : f32 to vector<4x1xf32>
    %171 = arith.maximumf %168, %170 : vector<4x1xf32>
    %172 = arith.mulf %168, %169 : vector<4x1xf32>
    %173 = arith.subf %171, %172 : vector<4x1xf32>
    %174 = math.absf %168 : vector<4x1xf32>
    %cst_59 = arith.constant 0.000000e+00 : f32
    %175 = vector.broadcast %cst_59 : f32 to vector<4x1xf32>
    %176 = arith.subf %175, %174 : vector<4x1xf32>
    %177 = math.exp %176 : vector<4x1xf32>
    %cst_60 = arith.constant 1.000000e+00 : f32
    %178 = vector.broadcast %cst_60 : f32 to vector<4x1xf32>
    %179 = arith.addf %178, %177 : vector<4x1xf32>
    %180 = math.log %179 : vector<4x1xf32>
    %181 = arith.addf %173, %180 : vector<4x1xf32>
    %182 = vector.shape_cast %181 : vector<4x1xf32> to vector<1x4x1xf32>
    %cst_61 = arith.constant dense<0.000000e+00> : vector<1xf32>
    %183 = vector.multi_reduction <add>, %182, %cst_61 [1, 2] : vector<1x4x1xf32> to vector<1xf32>
    %184 = vector.shape_cast %183 : vector<1xf32> to vector<1x1x1xf32>
    %185 = vector.extract %184[0, 0, 0] : f32 from vector<1x1x1xf32>
    %cst_62 = arith.constant 4.000000e+00 : f32
    %186 = arith.divf %185, %cst_62 : f32
    %c1_63 = arith.constant 1 : index
    %187 = memref.load %arg7[%c1_63] : memref<2xf32, #tpu.memory_space<smem>>
    memref.store %186, %arg7[%c1_63] : memref<2xf32, #tpu.memory_space<smem>>
    return
  }
}

</mosaic_0001>

<llo_original>
// kernel: mtb_forward.1
$region0: #{mtb_forward.1}
  #allocation0 [shape = 'u32[]', space=smem, size = 0x4, offset = 0x4, fixed_abs, tag = 'smem constant byte address 0x4 - core index']
  #allocation1 [shape = 'u32[144,128]{1,0:T(1,128)}', space=vmem, size = 0x12000, scoped, tag = 'internal scratch']
  %s0 = inlined_call_operand.vmem [shape: s32[128,2], index: 0, kind: input, shape index: {}]
  %s1 = inlined_call_operand.vmem [shape: s32[16,2], index: 1, kind: input, shape index: {}]
  %s2 = inlined_call_operand.vmem [shape: f32[4,1], index: 2, kind: input, shape index: {}]
  %s3 = inlined_call_operand.vmem [shape: bf16[512,128], index: 3, kind: input, shape index: {}]
  %s4 = inlined_call_operand.vmem [shape: bf16[128,512], index: 4, kind: input, shape index: {}]
  %s5 = inlined_call_operand.vmem [shape: f32[21,128], index: 5, kind: input, shape index: {}]
  %s6 = inlined_call_operand.vmem [shape: f32[2,256], index: 6, kind: input, shape index: {}]
  %s7 = inlined_call_operand.vmem [shape: f32[2], index: 7, kind: output, shape index: {}]
  %s8 = sld [smem:[#allocation0]]
  $region38: #{mtb_forward.1} parent=0
    _
  %s10 = ssub.s32 1, %s8
  %s11 = scalar_select 0, %s10, %s8
  $region1: #{mtb_forward.1} parent=0
    #allocation2 [shape = 'u8[512]{0}', space=smem, size = 0x200, scoped, tag = 'output window, operand 0, single buffered']
    #allocation3 [shape = 's32[1]{0}', space=sflag, size = 0x4, scoped, tag = 'scoped memory for mtb_forward.1']
    %12 = vsyncpa [#allocation3], 0
    // Predicated region
    $region2: #{mtb_forward.1} parent=1 // pred_check
      _
    $region3: #{mtb_forward.1} parent=1 // pred_check_branch
      %14 = sbr.rel (0) target = $region5
    $region4: #{mtb_forward.1} parent=1 // pred_region
      _
    $region5: #{mtb_forward.1} parent=1 // pred_fallthru
      _
    // Predicated region
    $region6: #{mtb_forward.1} parent=1 // pred_check
      _
    $region7: #{mtb_forward.1} parent=1 // pred_check_branch
      %16 = sbr.rel (0) target = $region9
    $region8: #{mtb_forward.1} parent=1 // pred_region
      _
    $region9: #{mtb_forward.1} parent=1 // pred_fallthru
      _
    // Predicated region
    $region10: #{mtb_forward.1} parent=1 // pred_check
      _
    $region11: #{mtb_forward.1} parent=1 // pred_check_branch
      %18 = sbr.rel (0) target = $region13
    $region12: #{mtb_forward.1} parent=1 // pred_region
      _
    $region13: #{mtb_forward.1} parent=1 // pred_fallthru
      _
    // Predicated region
    $region14: #{mtb_forward.1} parent=1 // pred_check
      _
    $region15: #{mtb_forward.1} parent=1 // pred_check_branch
      %20 = sbr.rel (0) target = $region17
    $region16: #{mtb_forward.1} parent=1 // pred_region
      _
    $region17: #{mtb_forward.1} parent=1 // pred_fallthru
      _
    // Predicated region
    $region18: #{mtb_forward.1} parent=1 // pred_check
      _
    $region19: #{mtb_forward.1} parent=1 // pred_check_branch
      %22 = sbr.rel (0) target = $region21
    $region20: #{mtb_forward.1} parent=1 // pred_region
      _
    $region21: #{mtb_forward.1} parent=1 // pred_fallthru
      _
    // Predicated region
    $region22: #{mtb_forward.1} parent=1 // pred_check
      _
    $region23: #{mtb_forward.1} parent=1 // pred_check_branch
      %24 = sbr.rel (0) target = $region25
    $region24: #{mtb_forward.1} parent=1 // pred_region
      _
    $region25: #{mtb_forward.1} parent=1 // pred_fallthru
      _
    // Predicated region
    $region26: #{mtb_forward.1} parent=1 // pred_check
      _
    $region27: #{mtb_forward.1} parent=1 // pred_check_branch
      %26 = sbr.rel (0) target = $region29
    $region28: #{mtb_forward.1} parent=1 // pred_region
      _
    $region29: #{mtb_forward.1} parent=1 // pred_fallthru
      _
    %v28 = vld [vmem:[%s0] sm:$0xff]
    %v29 = vld [vmem:[%s0 + $0x8] sm:$0xff]
    %v30 = vld [vmem:[%s0 + $0x10] sm:$0xff]
    %v31 = vld [vmem:[%s0 + $0x18] sm:$0xff]
    %v32 = vld [vmem:[%s0 + $0x20] sm:$0xff]
    %v33 = vld [vmem:[%s0 + $0x28] sm:$0xff]
    %v34 = vld [vmem:[%s0 + $0x30] sm:$0xff]
    %v35 = vld [vmem:[%s0 + $0x38] sm:$0xff]
    %v36 = vld [vmem:[%s0 + $0x40] sm:$0xff]
    %v37 = vld [vmem:[%s0 + $0x48] sm:$0xff]
    %v38 = vld [vmem:[%s0 + $0x50] sm:$0xff]
    %v39 = vld [vmem:[%s0 + $0x58] sm:$0xff]
    %v40 = vld [vmem:[%s0 + $0x60] sm:$0xff]
    %v41 = vld [vmem:[%s0 + $0x68] sm:$0xff]
    %v42 = vld [vmem:[%s0 + $0x70] sm:$0xff]
    %v43 = vld [vmem:[%s0 + $0x78] sm:$0xff]
    %v44 = vlaneseq
    %v45 = vand.u32 %v44, 127
    %v46 = vadd.s32 %v45, 128
    %v47 = vld [vmem:[%s3] sm:$0xf]
    %v48 = vld [vmem:[%s3 + $0x4] sm:$0xf]
    %v49 = vld [vmem:[%s3 + $0x8] sm:$0xf]
    %v50 = vld [vmem:[%s3 + $0xc] sm:$0xf]
    %v51 = vld [vmem:[%s3 + $0x10] sm:$0xf]
    %v52 = vld [vmem:[%s3 + $0x14] sm:$0xf]
    %v53 = vld [vmem:[%s3 + $0x18] sm:$0xf]
    %v54 = vld [vmem:[%s3 + $0x1c] sm:$0xf]
    %v55 = vld [vmem:[%s3 + $0x20] sm:$0xf]
    %v56 = vld [vmem:[%s3 + $0x24] sm:$0xf]
    %v57 = vld [vmem:[%s3 + $0x28] sm:$0xf]
    %v58 = vld [vmem:[%s3 + $0x2c] sm:$0xf]
    %v59 = vld [vmem:[%s3 + $0x30] sm:$0xf]
    %v60 = vld [vmem:[%s3 + $0x34] sm:$0xf]
    %v61 = vld [vmem:[%s3 + $0x38] sm:$0xf]
    %v62 = vld [vmem:[%s3 + $0x3c] sm:$0xf]
    %v63 = vld [vmem:[%s3 + $0x40] sm:$0xf]
    %v64 = vld [vmem:[%s3 + $0x44] sm:$0xf]
    %v65 = vld [vmem:[%s3 + $0x48] sm:$0xf]
    %v66 = vld [vmem:[%s3 + $0x4c] sm:$0xf]
    %v67 = vld [vmem:[%s3 + $0x50] sm:$0xf]
    %v68 = vld [vmem:[%s3 + $0x54] sm:$0xf]
    %v69 = vld [vmem:[%s3 + $0x58] sm:$0xf]
    %v70 = vld [vmem:[%s3 + $0x5c] sm:$0xf]
    %v71 = vld [vmem:[%s3 + $0x60] sm:$0xf]
    %v72 = vld [vmem:[%s3 + $0x64] sm:$0xf]
    %v73 = vld [vmem:[%s3 + $0x68] sm:$0xf]
    %v74 = vld [vmem:[%s3 + $0x6c] sm:$0xf]
    %v75 = vld [vmem:[%s3 + $0x70] sm:$0xf]
    %v76 = vld [vmem:[%s3 + $0x74] sm:$0xf]
    %v77 = vld [vmem:[%s3 + $0x78] sm:$0xf]
    %v78 = vld [vmem:[%s3 + $0x7c] sm:$0xf]
    %v79 = vld [vmem:[%s3 + $0x80] sm:$0xf]
    %v80 = vld [vmem:[%s3 + $0x84] sm:$0xf]
    %v81 = vld [vmem:[%s3 + $0x88] sm:$0xf]
    %v82 = vld [vmem:[%s3 + $0x8c] sm:$0xf]
    %v83 = vld [vmem:[%s3 + $0x90] sm:$0xf]
    %v84 = vld [vmem:[%s3 + $0x94] sm:$0xf]
    %v85 = vld [vmem:[%s3 + $0x98] sm:$0xf]
    %v86 = vld [vmem:[%s3 + $0x9c] sm:$0xf]
    %v87 = vld [vmem:[%s3 + $0xa0] sm:$0xf]
    %v88 = vld [vmem:[%s3 + $0xa4] sm:$0xf]
    %v89 = vld [vmem:[%s3 + $0xa8] sm:$0xf]
    %v90 = vld [vmem:[%s3 + $0xac] sm:$0xf]
    %v91 = vld [vmem:[%s3 + $0xb0] sm:$0xf]
    %v92 = vld [vmem:[%s3 + $0xb4] sm:$0xf]
    %v93 = vld [vmem:[%s3 + $0xb8] sm:$0xf]
    %v94 = vld [vmem:[%s3 + $0xbc] sm:$0xf]
    %v95 = vld [vmem:[%s3 + $0xc0] sm:$0xf]
    %v96 = vld [vmem:[%s3 + $0xc4] sm:$0xf]
    %v97 = vld [vmem:[%s3 + $0xc8] sm:$0xf]
    %v98 = vld [vmem:[%s3 + $0xcc] sm:$0xf]
    %v99 = vld [vmem:[%s3 + $0xd0] sm:$0xf]
    %v100 = vld [vmem:[%s3 + $0xd4] sm:$0xf]
    %v101 = vld [vmem:[%s3 + $0xd8] sm:$0xf]
    %v102 = vld [vmem:[%s3 + $0xdc] sm:$0xf]
    %v103 = vld [vmem:[%s3 + $0xe0] sm:$0xf]
    %v104 = vld [vmem:[%s3 + $0xe4] sm:$0xf]
    %v105 = vld [vmem:[%s3 + $0xe8] sm:$0xf]
    %v106 = vld [vmem:[%s3 + $0xec] sm:$0xf]
    %v107 = vld [vmem:[%s3 + $0xf0] sm:$0xf]
    %v108 = vld [vmem:[%s3 + $0xf4] sm:$0xf]
    %v109 = vld [vmem:[%s3 + $0xf8] sm:$0xf]
    %v110 = vld [vmem:[%s3 + $0xfc] sm:$0xf]
    %v111 = vld [vmem:[%s4] sm:$0xff]
    %v112 = vld [vmem:[%s4 + $0x10] sm:$0xff]
    %v113 = vld [vmem:[%s4 + $0x20] sm:$0xff]
    %v114 = vld [vmem:[%s4 + $0x30] sm:$0xff]
    %v115 = vld [vmem:[%s4 + $0x40] sm:$0xff]
    %v116 = vld [vmem:[%s4 + $0x50] sm:$0xff]
    %v117 = vld [vmem:[%s4 + $0x60] sm:$0xff]
    %v118 = vld [vmem:[%s4 + $0x70] sm:$0xff]
    %v119 = vld [vmem:[%s4 + $0x80] sm:$0xff]
    %v120 = vld [vmem:[%s4 + $0x90] sm:$0xff]
    %v121 = vld [vmem:[%s4 + $0xa0] sm:$0xff]
    %v122 = vld [vmem:[%s4 + $0xb0] sm:$0xff]
    %v123 = vld [vmem:[%s4 + $0xc0] sm:$0xff]
    %v124 = vld [vmem:[%s4 + $0xd0] sm:$0xff]
    %v125 = vld [vmem:[%s4 + $0xe0] sm:$0xff]
    %v126 = vld [vmem:[%s4 + $0xf0] sm:$0xff]
    %v127 = vld [vmem:[%s4 + $0x8] sm:$0xff]
    %v128 = vld [vmem:[%s4 + $0x18] sm:$0xff]
    %v129 = vld [vmem:[%s4 + $0x28] sm:$0xff]
    %v130 = vld [vmem:[%s4 + $0x38] sm:$0xff]
    %v131 = vld [vmem:[%s4 + $0x48] sm:$0xff]
    %v132 = vld [vmem:[%s4 + $0x58] sm:$0xff]
    %v133 = vld [vmem:[%s4 + $0x68] sm:$0xff]
    %v134 = vld [vmem:[%s4 + $0x78] sm:$0xff]
    %v135 = vld [vmem:[%s4 + $0x88] sm:$0xff]
    %v136 = vld [vmem:[%s4 + $0x98] sm:$0xff]
    %v137 = vld [vmem:[%s4 + $0xa8] sm:$0xff]
    %v138 = vld [vmem:[%s4 + $0xb8] sm:$0xff]
    %v139 = vld [vmem:[%s4 + $0xc8] sm:$0xff]
    %v140 = vld [vmem:[%s4 + $0xd8] sm:$0xff]
    %v141 = vld [vmem:[%s4 + $0xe8] sm:$0xff]
    %v142 = vld [vmem:[%s4 + $0xf8] sm:$0xff]
    %v143 = vld [vmem:[%s5] sm:$0xff]
    %v144 = vld [vmem:[%s5 + $0x8] sm:$0xff]
    %v145 = vld [vmem:[%s5 + $0x10] sm:$0x1]
    %v146 = vld [vmem:[%s5 + $0x11] sm:$0x1]
    %v147 = vld [vmem:[%s5 + $0x12] sm:$0x1]
    %v148 = vld [vmem:[%s5 + $0x13] sm:$0x1]
    %v149 = vld [vmem:[%s5 + $0x14] sm:$0x1]
    %v150 = vld [vmem:[%s6] ss:$2 sm:$0x3]
    %s151 = scalar_lea.vmem %s6, 1
    %v152 = vld [vmem:[%s151] ss:$2 sm:$0x3]
    %153 = vset.pattern.permute.xlu0 0
    %154 = vperm.xlu0 %153, %v28
    %v155 = vpop.permute.xlu0 %154
    %156 = vset.pattern.permute.xlu0 0
    %157 = vperm.xlu0 %156, %v29
    %v158 = vpop.permute.xlu0 %157
    %159 = vset.pattern.permute.xlu0 0
    %160 = vperm.xlu0 %159, %v30
    %v161 = vpop.permute.xlu0 %160
    %162 = vset.pattern.permute.xlu0 0
    %163 = vperm.xlu0 %162, %v31
    %v164 = vpop.permute.xlu0 %163
    %165 = vset.pattern.permute.xlu0 0
    %166 = vperm.xlu0 %165, %v32
    %v167 = vpop.permute.xlu0 %166
    %168 = vset.pattern.permute.xlu0 0
    %169 = vperm.xlu0 %168, %v33
    %v170 = vpop.permute.xlu0 %169
    %171 = vset.pattern.permute.xlu0 0
    %172 = vperm.xlu0 %171, %v34
    %v173 = vpop.permute.xlu0 %172
    %174 = vset.pattern.permute.xlu0 0
    %175 = vperm.xlu0 %174, %v35
    %v176 = vpop.permute.xlu0 %175
    %177 = vset.pattern.permute.xlu0 0
    %178 = vperm.xlu0 %177, %v36
    %v179 = vpop.permute.xlu0 %178
    %180 = vset.pattern.permute.xlu0 0
    %181 = vperm.xlu0 %180, %v37
    %v182 = vpop.permute.xlu0 %181
    %183 = vset.pattern.permute.xlu0 0
    %184 = vperm.xlu0 %183, %v38
    %v185 = vpop.permute.xlu0 %184
    %186 = vset.pattern.permute.xlu0 0
    %187 = vperm.xlu0 %186, %v39
    %v188 = vpop.permute.xlu0 %187
    %189 = vset.pattern.permute.xlu0 0
    %190 = vperm.xlu0 %189, %v40
    %v191 = vpop.permute.xlu0 %190
    %192 = vset.pattern.permute.xlu0 0
    %193 = vperm.xlu0 %192, %v41
    %v194 = vpop.permute.xlu0 %193
    %195 = vset.pattern.permute.xlu0 0
    %196 = vperm.xlu0 %195, %v42
    %v197 = vpop.permute.xlu0 %196
    %198 = vset.pattern.permute.xlu0 0
    %199 = vperm.xlu0 %198, %v43
    %v200 = vpop.permute.xlu0 %199
    %vm201 = vcmp.eq.s32.totalorder %v45, %v155
    %vm202 = vcmp.eq.s32.totalorder %v46, %v155
    %vm203 = vcmp.eq.s32.totalorder %v45, %v158
    %vm204 = vcmp.eq.s32.totalorder %v46, %v158
    %vm205 = vcmp.eq.s32.totalorder %v45, %v161
    %vm206 = vcmp.eq.s32.totalorder %v46, %v161
    %vm207 = vcmp.eq.s32.totalorder %v45, %v164
    %vm208 = vcmp.eq.s32.totalorder %v46, %v164
    %vm209 = vcmp.eq.s32.totalorder %v45, %v167
    %vm210 = vcmp.eq.s32.totalorder %v46, %v167
    %vm211 = vcmp.eq.s32.totalorder %v45, %v170
    %vm212 = vcmp.eq.s32.totalorder %v46, %v170
    %vm213 = vcmp.eq.s32.totalorder %v45, %v173
    %vm214 = vcmp.eq.s32.totalorder %v46, %v173
    %vm215 = vcmp.eq.s32.totalorder %v45, %v176
    %vm216 = vcmp.eq.s32.totalorder %v46, %v176
    %vm217 = vcmp.eq.s32.totalorder %v45, %v179
    %vm218 = vcmp.eq.s32.totalorder %v46, %v179
    %vm219 = vcmp.eq.s32.totalorder %v45, %v182
    %vm220 = vcmp.eq.s32.totalorder %v46, %v182
    %vm221 = vcmp.eq.s32.totalorder %v45, %v185
    %vm222 = vcmp.eq.s32.totalorder %v46, %v185
    %vm223 = vcmp.eq.s32.totalorder %v45, %v188
    %vm224 = vcmp.eq.s32.totalorder %v46, %v188
    %vm225 = vcmp.eq.s32.totalorder %v45, %v191
    %vm226 = vcmp.eq.s32.totalorder %v46, %v191
    %vm227 = vcmp.eq.s32.totalorder %v45, %v194
    %vm228 = vcmp.eq.s32.totalorder %v46, %v194
    %vm229 = vcmp.eq.s32.totalorder %v45, %v197
    %vm230 = vcmp.eq.s32.totalorder %v46, %v197
    %vm231 = vcmp.eq.s32.totalorder %v45, %v200
    %vm232 = vcmp.eq.s32.totalorder %v46, %v200
    %v233 = vsel %vm201, 1, 0
    %v234 = vsel %vm202, 1, 0
    %v235 = vsel %vm203, 1, 0
    %v236 = vsel %vm204, 1, 0
    %v237 = vsel %vm205, 1, 0
    %v238 = vsel %vm206, 1, 0
    %v239 = vsel %vm207, 1, 0
    %v240 = vsel %vm208, 1, 0
    %v241 = vsel %vm209, 1, 0
    %v242 = vsel %vm210, 1, 0
    %v243 = vsel %vm211, 1, 0
    %v244 = vsel %vm212, 1, 0
    %v245 = vsel %vm213, 1, 0
    %v246 = vsel %vm214, 1, 0
    %v247 = vsel %vm215, 1, 0
    %v248 = vsel %vm216, 1, 0
    %v249 = vsel %vm217, 1, 0
    %v250 = vsel %vm218, 1, 0
    %v251 = vsel %vm219, 1, 0
    %v252 = vsel %vm220, 1, 0
    %v253 = vsel %vm221, 1, 0
    %v254 = vsel %vm222, 1, 0
    %v255 = vsel %vm223, 1, 0
    %v256 = vsel %vm224, 1, 0
    %v257 = vsel %vm225, 1, 0
    %v258 = vsel %vm226, 1, 0
    %v259 = vsel %vm227, 1, 0
    %v260 = vsel %vm228, 1, 0
    %v261 = vsel %vm229, 1, 0
    %v262 = vsel %vm230, 1, 0
    %v263 = vsel %vm231, 1, 0
    %v264 = vsel %vm232, 1, 0
    %v265 = vcvt.s32.f32 %v233
    %v266 = vcvt.s32.f32 %v234
    %v267 = vcvt.s32.f32 %v235
    %v268 = vcvt.s32.f32 %v236
    %v269 = vcvt.s32.f32 %v237
    %v270 = vcvt.s32.f32 %v238
    %v271 = vcvt.s32.f32 %v239
    %v272 = vcvt.s32.f32 %v240
    %v273 = vcvt.s32.f32 %v241
    %v274 = vcvt.s32.f32 %v242
    %v275 = vcvt.s32.f32 %v243
    %v276 = vcvt.s32.f32 %v244
    %v277 = vcvt.s32.f32 %v245
    %v278 = vcvt.s32.f32 %v246
    %v279 = vcvt.s32.f32 %v247
    %v280 = vcvt.s32.f32 %v248
    %v281 = vcvt.s32.f32 %v249
    %v282 = vcvt.s32.f32 %v250
    %v283 = vcvt.s32.f32 %v251
    %v284 = vcvt.s32.f32 %v252
    %v285 = vcvt.s32.f32 %v253
    %v286 = vcvt.s32.f32 %v254
    %v287 = vcvt.s32.f32 %v255
    %v288 = vcvt.s32.f32 %v256
    %v289 = vcvt.s32.f32 %v257
    %v290 = vcvt.s32.f32 %v258
    %v291 = vcvt.s32.f32 %v259
    %v292 = vcvt.s32.f32 %v260
    %v293 = vcvt.s32.f32 %v261
    %v294 = vcvt.s32.f32 %v262
    %v295 = vcvt.s32.f32 %v263
    %v296 = vcvt.s32.f32 %v264
    %v297 = vpack.c.bf16 %v267, %v265
    %v298 = vpack.c.bf16 %v268, %v266
    %v299 = vpack.c.bf16 %v271, %v269
    %v300 = vpack.c.bf16 %v272, %v270
    %v301 = vpack.c.bf16 %v275, %v273
    %v302 = vpack.c.bf16 %v276, %v274
    %v303 = vpack.c.bf16 %v279, %v277
    %v304 = vpack.c.bf16 %v280, %v278
    %v305 = vpack.c.bf16 %v283, %v281
    %v306 = vpack.c.bf16 %v284, %v282
    %v307 = vpack.c.bf16 %v287, %v285
    %v308 = vpack.c.bf16 %v288, %v286
    %v309 = vpack.c.bf16 %v291, %v289
    %v310 = vpack.c.bf16 %v292, %v290
    %v311 = vpack.c.bf16 %v295, %v293
    %v312 = vpack.c.bf16 %v296, %v294
    %v345 = vunpack.c.l.b16 %v47
    %v346 = vunpack.c.l.b16 %v48
    %v347 = vunpack.c.l.b16 %v49
    %v348 = vunpack.c.l.b16 %v50
    %v349 = vunpack.c.l.b16 %v51
    %v350 = vunpack.c.l.b16 %v52
    %v351 = vunpack.c.l.b16 %v53
    %v352 = vunpack.c.l.b16 %v54
    %v353 = vunpack.c.l.b16 %v55
    %v354 = vunpack.c.l.b16 %v56
    %v355 = vunpack.c.l.b16 %v57
    %v356 = vunpack.c.l.b16 %v58
    %v357 = vunpack.c.l.b16 %v59
    %v358 = vunpack.c.l.b16 %v60
    %v359 = vunpack.c.l.b16 %v61
    %v360 = vunpack.c.l.b16 %v62
    %v361 = vunpack.c.l.b16 %v63
    %v362 = vunpack.c.l.b16 %v64
    %v363 = vunpack.c.l.b16 %v65
    %v364 = vunpack.c.l.b16 %v66
    %v365 = vunpack.c.l.b16 %v67
    %v366 = vunpack.c.l.b16 %v68
    %v367 = vunpack.c.l.b16 %v69
    %v368 = vunpack.c.l.b16 %v70
    %v369 = vunpack.c.l.b16 %v71
    %v370 = vunpack.c.l.b16 %v72
    %v371 = vunpack.c.l.b16 %v73
    %v372 = vunpack.c.l.b16 %v74
    %v373 = vunpack.c.l.b16 %v75
    %v374 = vunpack.c.l.b16 %v76
    %v375 = vunpack.c.l.b16 %v77
    %v376 = vunpack.c.l.b16 %v78
    %v377 = vpack.c.b16 %v346, %v345
    %v378 = vpack.c.b16 %v348, %v347
    %v379 = vpack.c.b16 %v350, %v349
    %v380 = vpack.c.b16 %v352, %v351
    %v381 = vpack.c.b16 %v354, %v353
    %v382 = vpack.c.b16 %v356, %v355
    %v383 = vpack.c.b16 %v358, %v357
    %v384 = vpack.c.b16 %v360, %v359
    %v385 = vpack.c.b16 %v362, %v361
    %v386 = vpack.c.b16 %v364, %v363
    %v387 = vpack.c.b16 %v366, %v365
    %v388 = vpack.c.b16 %v368, %v367
    %v389 = vpack.c.b16 %v370, %v369
    %v390 = vpack.c.b16 %v372, %v371
    %v391 = vpack.c.b16 %v374, %v373
    %v392 = vpack.c.b16 %v376, %v375
    %409 = vmatprep.subr.bf16.mxu0 0
    %410 = vmatpush1.bf16.msra.mxu0 %v377
    %411 = vmatprep.subr.bf16.mxu0 0
    %412 = vmatpush1.bf16.msra.mxu0 %v378
    %413 = vmatprep.subr.bf16.mxu0 0
    %414 = vmatpush1.bf16.msra.mxu0 %v379
    %415 = vmatprep.subr.bf16.mxu0 0
    %416 = vmatpush1.bf16.msra.mxu0 %v380
    %417 = vmatprep.subr.bf16.mxu0 0
    %418 = vmatpush1.bf16.msra.mxu0 %v381
    %419 = vmatprep.subr.bf16.mxu0 0
    %420 = vmatpush1.bf16.msra.mxu0 %v382
    %421 = vmatprep.subr.bf16.mxu0 0
    %422 = vmatpush1.bf16.msra.mxu0 %v383
    %423 = vmatprep.subr.bf16.mxu0 0
    %424 = vmatpush1.bf16.msra.mxu0 %v384
    %425 = vmatprep.subr.bf16.mxu0 0
    %426 = vmatpush1.bf16.msra.mxu0 %v385
    %427 = vmatprep.subr.bf16.mxu0 0
    %428 = vmatpush1.bf16.msra.mxu0 %v386
    %429 = vmatprep.subr.bf16.mxu0 0
    %430 = vmatpush1.bf16.msra.mxu0 %v387
    %431 = vmatprep.subr.bf16.mxu0 0
    %432 = vmatpush1.bf16.msra.mxu0 %v388
    %433 = vmatprep.subr.bf16.mxu0 0
    %434 = vmatpush1.bf16.msra.mxu0 %v389
    %435 = vmatprep.subr.bf16.mxu0 0
    %436 = vmatpush1.bf16.msra.mxu0 %v390
    %437 = vmatprep.subr.bf16.mxu0 0
    %438 = vmatpush1.bf16.msra.mxu0 %v391
    %439 = vmatprep.subr.bf16.mxu0 0
    %440 = vmatpush1.bf16.msra.mxu0 %v392
    %441 = vmatprep.mubr.bf16.mxu0 %v298
    %442 = vmatmul.mubr.bf16.gmra.mrb[0].mxu0 %v297
    %v443 = vpop.f32.mrb[0].mxu0
    %v444 = vadd.f32 0.0, %v443
    %v445 = vpop.f32.mrb[0].mxu0
    %v446 = vpop.f32.mrb[0].mxu0
    %v447 = vadd.f32 0.0, %v446
    %v448 = vpop.f32.mrb[0].mxu0
    %449 = vmatprep.mubr.bf16.mxu0 %v300
    %450 = vmatmul.mubr.bf16.gmra.mrb[0].mxu0 %v299
    %v451 = vpop.f32.mrb[0].mxu0
    %v452 = vadd.f32 0.0, %v451
    %v453 = vpop.f32.mrb[0].mxu0
    %v454 = vpop.f32.mrb[0].mxu0
    %v455 = vadd.f32 0.0, %v454
    %v456 = vpop.f32.mrb[0].mxu0
    %457 = vmatprep.mubr.bf16.mxu0 %v302
    %458 = vmatmul.mubr.bf16.gmra.mrb[0].mxu0 %v301
    %v459 = vpop.f32.mrb[0].mxu0
    %v460 = vadd.f32 0.0, %v459
    %v461 = vpop.f32.mrb[0].mxu0
    %v462 = vpop.f32.mrb[0].mxu0
    %v463 = vadd.f32 0.0, %v462
    %v464 = vpop.f32.mrb[0].mxu0
    %465 = vmatprep.mubr.bf16.mxu0 %v304
    %466 = vmatmul.mubr.bf16.gmra.mrb[0].mxu0 %v303
    %v467 = vpop.f32.mrb[0].mxu0
    %v468 = vadd.f32 0.0, %v467
    %v469 = vpop.f32.mrb[0].mxu0
    %v470 = vpop.f32.mrb[0].mxu0
    %v471 = vadd.f32 0.0, %v470
    %v472 = vpop.f32.mrb[0].mxu0
    %473 = vmatprep.mubr.bf16.mxu0 %v306
    %474 = vmatmul.mubr.bf16.gmra.mrb[0].mxu0 %v305
    %v475 = vpop.f32.mrb[0].mxu0
    %v476 = vadd.f32 0.0, %v475
    %v477 = vpop.f32.mrb[0].mxu0
    %v478 = vpop.f32.mrb[0].mxu0
    %v479 = vadd.f32 0.0, %v478
    %v480 = vpop.f32.mrb[0].mxu0
    %481 = vmatprep.mubr.bf16.mxu0 %v308
    %482 = vmatmul.mubr.bf16.gmra.mrb[0].mxu0 %v307
    %v483 = vpop.f32.mrb[0].mxu0
    %v484 = vadd.f32 0.0, %v483
    %v485 = vpop.f32.mrb[0].mxu0
    %v486 = vpop.f32.mrb[0].mxu0
    %v487 = vadd.f32 0.0, %v486
    %v488 = vpop.f32.mrb[0].mxu0
    %489 = vmatprep.mubr.bf16.mxu0 %v310
    %490 = vmatmul.mubr.bf16.gmra.mrb[0].mxu0 %v309
    %v491 = vpop.f32.mrb[0].mxu0
    %v492 = vadd.f32 0.0, %v491
    %v493 = vpop.f32.mrb[0].mxu0
    %v494 = vpop.f32.mrb[0].mxu0
    %v495 = vadd.f32 0.0, %v494
    %v496 = vpop.f32.mrb[0].mxu0
    %497 = vmatprep.mubr.bf16.mxu0 %v312
    %498 = vmatmul.mubr.bf16.gmra.mrb[0].mxu0 %v311
    %v499 = vpop.f32.mrb[0].mxu0
    %v500 = vadd.f32 0.0, %v499
    %v501 = vpop.f32.mrb[0].mxu0
    %v502 = vpop.f32.mrb[0].mxu0
    %v503 = vadd.f32 0.0, %v502
    %v504 = vpop.f32.mrb[0].mxu0
    %505 = vdwg.mxu0
    %v506 = vadd.f32 %v444, %v143
    %v507 = vadd.f32 %v447, %v144
    %v508 = vadd.f32 %v452, %v143
    %v509 = vadd.f32 %v455, %v144
    %v510 = vadd.f32 %v460, %v143
    %v511 = vadd.f32 %v463, %v144
    %v512 = vadd.f32 %v468, %v143
    %v513 = vadd.f32 %v471, %v144
    %v514 = vadd.f32 %v476, %v143
    %v515 = vadd.f32 %v479, %v144
    %v516 = vadd.f32 %v484, %v143
    %v517 = vadd.f32 %v487, %v144
    %v518 = vadd.f32 %v492, %v143
    %v519 = vadd.f32 %v495, %v144
    %v520 = vadd.f32 %v500, %v143
    %v521 = vadd.f32 %v503, %v144
    %522 = vadd.xlane.f32.xlu0 %v506
    %v523 = vpop.xlane.xlu0 %522
    %524 = vadd.xlane.f32.xlu0 %v507
    %v525 = vpop.xlane.xlu0 %524
    %526 = vadd.xlane.f32.xlu0 %v508
    %v527 = vpop.xlane.xlu0 %526
    %528 = vadd.xlane.f32.xlu0 %v509
    %v529 = vpop.xlane.xlu0 %528
    %530 = vadd.xlane.f32.xlu0 %v510
    %v531 = vpop.xlane.xlu0 %530
    %532 = vadd.xlane.f32.xlu0 %v511
    %v533 = vpop.xlane.xlu0 %532
    %534 = vadd.xlane.f32.xlu0 %v512
    %v535 = vpop.xlane.xlu0 %534
    %536 = vadd.xlane.f32.xlu0 %v513
    %v537 = vpop.xlane.xlu0 %536
    %538 = vadd.xlane.f32.xlu0 %v514
    %v539 = vpop.xlane.xlu0 %538
    %540 = vadd.xlane.f32.xlu0 %v515
    %v541 = vpop.xlane.xlu0 %540
    %542 = vadd.xlane.f32.xlu0 %v516
    %v543 = vpop.xlane.xlu0 %542
    %544 = vadd.xlane.f32.xlu0 %v517
    %v545 = vpop.xlane.xlu0 %544
    %546 = vadd.xlane.f32.xlu0 %v518
    %v547 = vpop.xlane.xlu0 %546
    %548 = vadd.xlane.f32.xlu0 %v519
    %v549 = vpop.xlane.xlu0 %548
    %550 = vadd.xlane.f32.xlu0 %v520
    %v551 = vpop.xlane.xlu0 %550
    %552 = vadd.xlane.f32.xlu0 %v521
    %v553 = vpop.xlane.xlu0 %552
    %v554 = vrcp.pop 128.0
    %v555 = vmul.f32 %v523, %v554
    %v556 = vmul.f32 %v525, %v554
    %v557 = vmul.f32 %v527, %v554
    %v558 = vmul.f32 %v529, %v554
    %v559 = vmul.f32 %v531, %v554
    %v560 = vmul.f32 %v533, %v554
    %v561 = vmul.f32 %v535, %v554
    %v562 = vmul.f32 %v537, %v554
    %v563 = vmul.f32 %v539, %v554
    %v564 = vmul.f32 %v541, %v554
    %v565 = vmul.f32 %v543, %v554
    %v566 = vmul.f32 %v545, %v554
    %v567 = vmul.f32 %v547, %v554
    %v568 = vmul.f32 %v549, %v554
    %v569 = vmul.f32 %v551, %v554
    %v570 = vmul.f32 %v553, %v554
    %v571 = vsub.f32 %v506, %v555
    %v572 = vsub.f32 %v507, %v556
    %v573 = vsub.f32 %v508, %v557
    %v574 = vsub.f32 %v509, %v558
    %v575 = vsub.f32 %v510, %v559
    %v576 = vsub.f32 %v511, %v560
    %v577 = vsub.f32 %v512, %v561
    %v578 = vsub.f32 %v513, %v562
    %v579 = vsub.f32 %v514, %v563
    %v580 = vsub.f32 %v515, %v564
    %v581 = vsub.f32 %v516, %v565
    %v582 = vsub.f32 %v517, %v566
    %v583 = vsub.f32 %v518, %v567
    %v584 = vsub.f32 %v519, %v568
    %v585 = vsub.f32 %v520, %v569
    %v586 = vsub.f32 %v521, %v570
    %v587 = vmul.f32 %v571, %v571
    %v588 = vmul.f32 %v572, %v572
    %v589 = vmul.f32 %v573, %v573
    %v590 = vmul.f32 %v574, %v574
    %v591 = vmul.f32 %v575, %v575
    %v592 = vmul.f32 %v576, %v576
    %v593 = vmul.f32 %v577, %v577
    %v594 = vmul.f32 %v578, %v578
    %v595 = vmul.f32 %v579, %v579
    %v596 = vmul.f32 %v580, %v580
    %v597 = vmul.f32 %v581, %v581
    %v598 = vmul.f32 %v582, %v582
    %v599 = vmul.f32 %v583, %v583
    %v600 = vmul.f32 %v584, %v584
    %v601 = vmul.f32 %v585, %v585
    %v602 = vmul.f32 %v586, %v586
    %603 = vadd.xlane.f32.xlu0 %v587
    %v604 = vpop.xlane.xlu0 %603
    %605 = vadd.xlane.f32.xlu0 %v588
    %v606 = vpop.xlane.xlu0 %605
    %607 = vadd.xlane.f32.xlu0 %v589
    %v608 = vpop.xlane.xlu0 %607
    %609 = vadd.xlane.f32.xlu0 %v590
    %v610 = vpop.xlane.xlu0 %609
    %611 = vadd.xlane.f32.xlu0 %v591
    %v612 = vpop.xlane.xlu0 %611
    %613 = vadd.xlane.f32.xlu0 %v592
    %v614 = vpop.xlane.xlu0 %613
    %615 = vadd.xlane.f32.xlu0 %v593
    %v616 = vpop.xlane.xlu0 %615
    %617 = vadd.xlane.f32.xlu0 %v594
    %v618 = vpop.xlane.xlu0 %617
    %619 = vadd.xlane.f32.xlu0 %v595
    %v620 = vpop.xlane.xlu0 %619
    %621 = vadd.xlane.f32.xlu0 %v596
    %v622 = vpop.xlane.xlu0 %621
    %623 = vadd.xlane.f32.xlu0 %v597
    %v624 = vpop.xlane.xlu0 %623
    %625 = vadd.xlane.f32.xlu0 %v598
    %v626 = vpop.xlane.xlu0 %625
    %627 = vadd.xlane.f32.xlu0 %v599
    %v628 = vpop.xlane.xlu0 %627
    %629 = vadd.xlane.f32.xlu0 %v600
    %v630 = vpop.xlane.xlu0 %629
    %631 = vadd.xlane.f32.xlu0 %v601
    %v632 = vpop.xlane.xlu0 %631
    %633 = vadd.xlane.f32.xlu0 %v602
    %v634 = vpop.xlane.xlu0 %633
    %v635 = vmul.f32 %v604, %v554
    %v636 = vmul.f32 %v606, %v554
    %v637 = vmul.f32 %v608, %v554
    %v638 = vmul.f32 %v610, %v554
    %v639 = vmul.f32 %v612, %v554
    %v640 = vmul.f32 %v614, %v554
    %v641 = vmul.f32 %v616, %v554
    %v642 = vmul.f32 %v618, %v554
    %v643 = vmul.f32 %v620, %v554
    %v644 = vmul.f32 %v622, %v554
    %v645 = vmul.f32 %v624, %v554
    %v646 = vmul.f32 %v626, %v554
    %v647 = vmul.f32 %v628, %v554
    %v648 = vmul.f32 %v630, %v554
    %v649 = vmul.f32 %v632, %v554
    %v650 = vmul.f32 %v634, %v554
    %v651 = vadd.f32 %v635, 1e-12
    %v652 = vadd.f32 %v636, 1e-12
    %v653 = vadd.f32 %v637, 1e-12
    %v654 = vadd.f32 %v638, 1e-12
    %v655 = vadd.f32 %v639, 1e-12
    %v656 = vadd.f32 %v640, 1e-12
    %v657 = vadd.f32 %v641, 1e-12
    %v658 = vadd.f32 %v642, 1e-12
    %v659 = vadd.f32 %v643, 1e-12
    %v660 = vadd.f32 %v644, 1e-12
    %v661 = vadd.f32 %v645, 1e-12
    %v662 = vadd.f32 %v646, 1e-12
    %v663 = vadd.f32 %v647, 1e-12
    %v664 = vadd.f32 %v648, 1e-12
    %v665 = vadd.f32 %v649, 1e-12
    %v666 = vadd.f32 %v650, 1e-12
    %v667 = vrsqrt.pop %v651
    %v668 = vrsqrt.pop %v652
    %v669 = vrsqrt.pop %v653
    %v670 = vrsqrt.pop %v654
    %v671 = vrsqrt.pop %v655
    %v672 = vrsqrt.pop %v656
    %v673 = vrsqrt.pop %v657
    %v674 = vrsqrt.pop %v658
    %v675 = vrsqrt.pop %v659
    %v676 = vrsqrt.pop %v660
    %v677 = vrsqrt.pop %v661
    %v678 = vrsqrt.pop %v662
    %v679 = vrsqrt.pop %v663
    %v680 = vrsqrt.pop %v664
    %v681 = vrsqrt.pop %v665
    %v682 = vrsqrt.pop %v666
    %v683 = vmul.f32 %v571, %v667
    %v684 = vmul.f32 %v572, %v668
    %v685 = vmul.f32 %v573, %v669
    %v686 = vmul.f32 %v574, %v670
    %v687 = vmul.f32 %v575, %v671
    %v688 = vmul.f32 %v576, %v672
    %v689 = vmul.f32 %v577, %v673
    %v690 = vmul.f32 %v578, %v674
    %v691 = vmul.f32 %v579, %v675
    %v692 = vmul.f32 %v580, %v676
    %v693 = vmul.f32 %v581, %v677
    %v694 = vmul.f32 %v582, %v678
    %v695 = vmul.f32 %v583, %v679
    %v696 = vmul.f32 %v584, %v680
    %v697 = vmul.f32 %v585, %v681
    %v698 = vmul.f32 %v586, %v682
    %v699 = vlaneseq
    %v700 = vshrl.u32 %v699, 7
    %v701 = vsub.s32 0, %v700
    %v702 = vrot.slane %v145, %v701
    %v703 = vmul.f32 %v683, %v702
    %v704 = vmul.f32 %v684, %v702
    %v705 = vmul.f32 %v685, %v702
    %v706 = vmul.f32 %v686, %v702
    %v707 = vmul.f32 %v687, %v702
    %v708 = vmul.f32 %v688, %v702
    %v709 = vmul.f32 %v689, %v702
    %v710 = vmul.f32 %v690, %v702
    %v711 = vmul.f32 %v691, %v702
    %v712 = vmul.f32 %v692, %v702
    %v713 = vmul.f32 %v693, %v702
    %v714 = vmul.f32 %v694, %v702
    %v715 = vmul.f32 %v695, %v702
    %v716 = vmul.f32 %v696, %v702
    %v717 = vmul.f32 %v697, %v702
    %v718 = vmul.f32 %v698, %v702
    %v719 = vlaneseq
    %v720 = vshrl.u32 %v719, 7
    %v721 = vsub.s32 0, %v720
    %v722 = vrot.slane %v146, %v721
    %v723 = vadd.f32 %v703, %v722
    %v724 = vadd.f32 %v704, %v722
    %v725 = vadd.f32 %v705, %v722
    %v726 = vadd.f32 %v706, %v722
    %v727 = vadd.f32 %v707, %v722
    %v728 = vadd.f32 %v708, %v722
    %v729 = vadd.f32 %v709, %v722
    %v730 = vadd.f32 %v710, %v722
    %v731 = vadd.f32 %v711, %v722
    %v732 = vadd.f32 %v712, %v722
    %v733 = vadd.f32 %v713, %v722
    %v734 = vadd.f32 %v714, %v722
    %v735 = vadd.f32 %v715, %v722
    %v736 = vadd.f32 %v716, %v722
    %v737 = vadd.f32 %v717, %v722
    %v738 = vadd.f32 %v718, %v722
    %v739 = vpack.c.bf16 %v724, %v723
    %v740 = vpack.c.bf16 %v726, %v725
    %v741 = vpack.c.bf16 %v728, %v727
    %v742 = vpack.c.bf16 %v730, %v729
    %v743 = vpack.c.bf16 %v732, %v731
    %v744 = vpack.c.bf16 %v734, %v733
    %v745 = vpack.c.bf16 %v736, %v735
    %v746 = vpack.c.bf16 %v738, %v737
    %v748 = vlaneseq
    %v749 = vshrl.u32 %v748, 7
    %v750 = vsub.s32 0, %v749
    %v751 = vrot.slane %v150, %v750
    %v752 = vlaneseq
    %v753 = vshrl.u32 %v752, 7
    %v754 = vsub.s32 1, %v753
    %v755 = vrot.slane %v150, %v754
    %v774 = vunpack.c.l.b16 %v111
    %v775 = vunpack.c.h.b16 %v111
    %v776 = vunpack.c.l.b16 %v112
    %v777 = vunpack.c.h.b16 %v112
    %v778 = vunpack.c.l.b16 %v113
    %v779 = vunpack.c.h.b16 %v113
    %v780 = vunpack.c.l.b16 %v114
    %v781 = vunpack.c.h.b16 %v114
    %v782 = vunpack.c.l.b16 %v115
    %v783 = vunpack.c.h.b16 %v115
    %v784 = vunpack.c.l.b16 %v116
    %v785 = vunpack.c.h.b16 %v116
    %v786 = vunpack.c.l.b16 %v117
    %v787 = vunpack.c.h.b16 %v117
    %v788 = vunpack.c.l.b16 %v118
    %v789 = vunpack.c.h.b16 %v118
    %v790 = vunpack.c.l.b16 %v119
    %v791 = vunpack.c.h.b16 %v119
    %v792 = vunpack.c.l.b16 %v120
    %v793 = vunpack.c.h.b16 %v120
    %v794 = vunpack.c.l.b16 %v121
    %v795 = vunpack.c.h.b16 %v121
    %v796 = vunpack.c.l.b16 %v122
    %v797 = vunpack.c.h.b16 %v122
    %v798 = vunpack.c.l.b16 %v123
    %v799 = vunpack.c.h.b16 %v123
    %v800 = vunpack.c.l.b16 %v124
    %v801 = vunpack.c.h.b16 %v124
    %v802 = vunpack.c.l.b16 %v125
    %v803 = vunpack.c.h.b16 %v125
    %v804 = vunpack.c.l.b16 %v126
    %v805 = vunpack.c.h.b16 %v126
    %v806 = vpack.c.b16 %v776, %v774
    %v807 = vpack.c.b16 %v777, %v775
    %v808 = vpack.c.b16 %v780, %v778
    %v809 = vpack.c.b16 %v781, %v779
    %v810 = vpack.c.b16 %v784, %v782
    %v811 = vpack.c.b16 %v785, %v783
    %v812 = vpack.c.b16 %v788, %v786
    %v813 = vpack.c.b16 %v789, %v787
    %v814 = vpack.c.b16 %v792, %v790
    %v815 = vpack.c.b16 %v793, %v791
    %v816 = vpack.c.b16 %v796, %v794
    %v817 = vpack.c.b16 %v797, %v795
    %v818 = vpack.c.b16 %v800, %v798
    %v819 = vpack.c.b16 %v801, %v799
    %v820 = vpack.c.b16 %v804, %v802
    %v821 = vpack.c.b16 %v805, %v803
    %838 = vmatprep.subr.bf16.mxu0 %v807
    %839 = vmatpush1.bf16.msra.mxu0 %v806
    %840 = vmatprep.subr.bf16.mxu0 %v809
    %841 = vmatpush1.bf16.msra.mxu0 %v808
    %842 = vmatprep.subr.bf16.mxu0 %v811
    %843 = vmatpush1.bf16.msra.mxu0 %v810
    %844 = vmatprep.subr.bf16.mxu0 %v813
    %845 = vmatpush1.bf16.msra.mxu0 %v812
    %846 = vmatprep.subr.bf16.mxu0 %v815
    %847 = vmatpush1.bf16.msra.mxu0 %v814
    %848 = vmatprep.subr.bf16.mxu0 %v817
    %849 = vmatpush1.bf16.msra.mxu0 %v816
    %850 = vmatprep.subr.bf16.mxu0 %v819
    %851 = vmatpush1.bf16.msra.mxu0 %v818
    %852 = vmatprep.subr.bf16.mxu0 %v821
    %853 = vmatpush1.bf16.msra.mxu0 %v820
    %854 = vmatprep.subr.bf16.mxu0 0
    %855 = vmatpush1.bf16.msra.mxu0 0
    %856 = vmatprep.subr.bf16.mxu0 0
    %857 = vmatpush1.bf16.msra.mxu0 0
    %858 = vmatprep.subr.bf16.mxu0 0
    %859 = vmatpush1.bf16.msra.mxu0 0
    %860 = vmatprep.subr.bf16.mxu0 0
    %861 = vmatpush1.bf16.msra.mxu0 0
    %862 = vmatprep.subr.bf16.mxu0 0
    %863 = vmatpush1.bf16.msra.mxu0 0
    %864 = vmatprep.subr.bf16.mxu0 0
    %865 = vmatpush1.bf16.msra.mxu0 0
    %866 = vmatprep.subr.bf16.mxu0 0
    %867 = vmatpush1.bf16.msra.mxu0 0
    %868 = vmatprep.subr.bf16.mxu0 0
    %869 = vmatpush1.bf16.msra.mxu0 0
    %870 = vmatprep.mubr.bf16.mxu0 0
    %871 = vmatmul.mubr.bf16.gmra.mrb[0].mxu0 %v739
    %v872 = vpop.f32.mrb[0].mxu0
    %v873 = vadd.f32 %v751, %v872
    %v874 = vpop.f32.mrb[0].mxu0
    %v875 = vadd.f32 %v755, %v874
    %v876 = vpop.f32.mrb[0].mxu0
    %v877 = vadd.f32 %v751, %v876
    %v878 = vpop.f32.mrb[0].mxu0
    %v879 = vadd.f32 %v755, %v878
    %880 = vmatprep.mubr.bf16.mxu0 0
    %881 = vmatmul.mubr.bf16.gmra.mrb[0].mxu0 %v740
    %v882 = vpop.f32.mrb[0].mxu0
    %v883 = vadd.f32 %v751, %v882
    %v884 = vpop.f32.mrb[0].mxu0
    %v885 = vadd.f32 %v755, %v884
    %v886 = vpop.f32.mrb[0].mxu0
    %v887 = vadd.f32 %v751, %v886
    %v888 = vpop.f32.mrb[0].mxu0
    %v889 = vadd.f32 %v755, %v888
    %890 = vmatprep.mubr.bf16.mxu0 0
    %891 = vmatmul.mubr.bf16.gmra.mrb[0].mxu0 %v741
    %v892 = vpop.f32.mrb[0].mxu0
    %v893 = vadd.f32 %v751, %v892
    %v894 = vpop.f32.mrb[0].mxu0
    %v895 = vadd.f32 %v755, %v894
    %v896 = vpop.f32.mrb[0].mxu0
    %v897 = vadd.f32 %v751, %v896
    %v898 = vpop.f32.mrb[0].mxu0
    %v899 = vadd.f32 %v755, %v898
    %900 = vmatprep.mubr.bf16.mxu0 0
    %901 = vmatmul.mubr.bf16.gmra.mrb[0].mxu0 %v742
    %v902 = vpop.f32.mrb[0].mxu0
    %v903 = vadd.f32 %v751, %v902
    %v904 = vpop.f32.mrb[0].mxu0
    %v905 = vadd.f32 %v755, %v904
    %v906 = vpop.f32.mrb[0].mxu0
    %v907 = vadd.f32 %v751, %v906
    %v908 = vpop.f32.mrb[0].mxu0
    %v909 = vadd.f32 %v755, %v908
    %910 = vmatprep.mubr.bf16.mxu0 0
    %911 = vmatmul.mubr.bf16.gmra.mrb[0].mxu0 %v743
    %v912 = vpop.f32.mrb[0].mxu0
    %v913 = vadd.f32 %v751, %v912
    %v914 = vpop.f32.mrb[0].mxu0
    %v915 = vadd.f32 %v755, %v914
    %v916 = vpop.f32.mrb[0].mxu0
    %v917 = vadd.f32 %v751, %v916
    %v918 = vpop.f32.mrb[0].mxu0
    %v919 = vadd.f32 %v755, %v918
    %920 = vmatprep.mubr.bf16.mxu0 0
    %921 = vmatmul.mubr.bf16.gmra.mrb[0].mxu0 %v744
    %v922 = vpop.f32.mrb[0].mxu0
    %v923 = vadd.f32 %v751, %v922
    %v924 = vpop.f32.mrb[0].mxu0
    %v925 = vadd.f32 %v755, %v924
    %v926 = vpop.f32.mrb[0].mxu0
    %v927 = vadd.f32 %v751, %v926
    %v928 = vpop.f32.mrb[0].mxu0
    %v929 = vadd.f32 %v755, %v928
    %930 = vmatprep.mubr.bf16.mxu0 0
    %931 = vmatmul.mubr.bf16.gmra.mrb[0].mxu0 %v745
    %v932 = vpop.f32.mrb[0].mxu0
    %v933 = vadd.f32 %v751, %v932
    %v934 = vpop.f32.mrb[0].mxu0
    %v935 = vadd.f32 %v755, %v934
    %v936 = vpop.f32.mrb[0].mxu0
    %v937 = vadd.f32 %v751, %v936
    %v938 = vpop.f32.mrb[0].mxu0
    %v939 = vadd.f32 %v755, %v938
    %940 = vmatprep.mubr.bf16.mxu0 0
    %941 = vmatmul.mubr.bf16.gmra.mrb[0].mxu0 %v746
    %v942 = vpop.f32.mrb[0].mxu0
    %v943 = vadd.f32 %v751, %v942
    %v944 = vpop.f32.mrb[0].mxu0
    %v945 = vadd.f32 %v755, %v944
    %v946 = vpop.f32.mrb[0].mxu0
    %v947 = vadd.f32 %v751, %v946
    %v948 = vpop.f32.mrb[0].mxu0
    %v949 = vadd.f32 %v755, %v948
    %950 = vdwg.mxu0
    %v951 = vmul.f32 %v873, %v873
    %v952 = vmul.f32 %v875, %v875
    %v953 = vmul.f32 %v877, %v877
    %v954 = vmul.f32 %v879, %v879
    %v955 = vmul.f32 %v883, %v883
    %v956 = vmul.f32 %v885, %v885
    %v957 = vmul.f32 %v887, %v887
    %v958 = vmul.f32 %v889, %v889
    %v959 = vmul.f32 %v893, %v893
    %v960 = vmul.f32 %v895, %v895
    %v961 = vmul.f32 %v897, %v897
    %v962 = vmul.f32 %v899, %v899
    %v963 = vmul.f32 %v903, %v903
    %v964 = vmul.f32 %v905, %v905
    %v965 = vmul.f32 %v907, %v907
    %v966 = vmul.f32 %v909, %v909
    %v967 = vmul.f32 %v913, %v913
    %v968 = vmul.f32 %v915, %v915
    %v969 = vmul.f32 %v917, %v917
    %v970 = vmul.f32 %v919, %v919
    %v971 = vmul.f32 %v923, %v923
    %v972 = vmul.f32 %v925, %v925
    %v973 = vmul.f32 %v927, %v927
    %v974 = vmul.f32 %v929, %v929
    %v975 = vmul.f32 %v933, %v933
    %v976 = vmul.f32 %v935, %v935
    %v977 = vmul.f32 %v937, %v937
    %v978 = vmul.f32 %v939, %v939
    %v979 = vmul.f32 %v943, %v943
    %v980 = vmul.f32 %v945, %v945
    %v981 = vmul.f32 %v947, %v947
    %v982 = vmul.f32 %v949, %v949
    %v983 = vmul.f32 %v873, %v951
    %v984 = vmul.f32 %v875, %v952
    %v985 = vmul.f32 %v877, %v953
    %v986 = vmul.f32 %v879, %v954
    %v987 = vmul.f32 %v883, %v955
    %v988 = vmul.f32 %v885, %v956
    %v989 = vmul.f32 %v887, %v957
    %v990 = vmul.f32 %v889, %v958
    %v991 = vmul.f32 %v893, %v959
    %v992 = vmul.f32 %v895, %v960
    %v993 = vmul.f32 %v897, %v961
    %v994 = vmul.f32 %v899, %v962
    %v995 = vmul.f32 %v903, %v963
    %v996 = vmul.f32 %v905, %v964
    %v997 = vmul.f32 %v907, %v965
    %v998 = vmul.f32 %v909, %v966
    %v999 = vmul.f32 %v913, %v967
    %v1000 = vmul.f32 %v915, %v968
    %v1001 = vmul.f32 %v917, %v969
    %v1002 = vmul.f32 %v919, %v970
    %v1003 = vmul.f32 %v923, %v971
    %v1004 = vmul.f32 %v925, %v972
    %v1005 = vmul.f32 %v927, %v973
    %v1006 = vmul.f32 %v929, %v974
    %v1007 = vmul.f32 %v933, %v975
    %v1008 = vmul.f32 %v935, %v976
    %v1009 = vmul.f32 %v937, %v977
    %v1010 = vmul.f32 %v939, %v978
    %v1011 = vmul.f32 %v943, %v979
    %v1012 = vmul.f32 %v945, %v980
    %v1013 = vmul.f32 %v947, %v981
    %v1014 = vmul.f32 %v949, %v982
    %v1015 = vmul.f32 %v983, 0.044715
    %v1016 = vmul.f32 %v984, 0.044715
    %v1017 = vmul.f32 %v985, 0.044715
    %v1018 = vmul.f32 %v986, 0.044715
    %v1019 = vmul.f32 %v987, 0.044715
    %v1020 = vmul.f32 %v988, 0.044715
    %v1021 = vmul.f32 %v989, 0.044715
    %v1022 = vmul.f32 %v990, 0.044715
    %v1023 = vmul.f32 %v991, 0.044715
    %v1024 = vmul.f32 %v992, 0.044715
    %v1025 = vmul.f32 %v993, 0.044715
    %v1026 = vmul.f32 %v994, 0.044715
    %v1027 = vmul.f32 %v995, 0.044715
    %v1028 = vmul.f32 %v996, 0.044715
    %v1029 = vmul.f32 %v997, 0.044715
    %v1030 = vmul.f32 %v998, 0.044715
    %v1031 = vmul.f32 %v999, 0.044715
    %v1032 = vmul.f32 %v1000, 0.044715
    %v1033 = vmul.f32 %v1001, 0.044715
    %v1034 = vmul.f32 %v1002, 0.044715
    %v1035 = vmul.f32 %v1003, 0.044715
    %v1036 = vmul.f32 %v1004, 0.044715
    %v1037 = vmul.f32 %v1005, 0.044715
    %v1038 = vmul.f32 %v1006, 0.044715
    %v1039 = vmul.f32 %v1007, 0.044715
    %v1040 = vmul.f32 %v1008, 0.044715
    %v1041 = vmul.f32 %v1009, 0.044715
    %v1042 = vmul.f32 %v1010, 0.044715
    %v1043 = vmul.f32 %v1011, 0.044715
    %v1044 = vmul.f32 %v1012, 0.044715
    %v1045 = vmul.f32 %v1013, 0.044715
    %v1046 = vmul.f32 %v1014, 0.044715
    %v1047 = vadd.f32 %v873, %v1015
    %v1048 = vadd.f32 %v875, %v1016
    %v1049 = vadd.f32 %v877, %v1017
    %v1050 = vadd.f32 %v879, %v1018
    %v1051 = vadd.f32 %v883, %v1019
    %v1052 = vadd.f32 %v885, %v1020
    %v1053 = vadd.f32 %v887, %v1021
    %v1054 = vadd.f32 %v889, %v1022
    %v1055 = vadd.f32 %v893, %v1023
    %v1056 = vadd.f32 %v895, %v1024
    %v1057 = vadd.f32 %v897, %v1025
    %v1058 = vadd.f32 %v899, %v1026
    %v1059 = vadd.f32 %v903, %v1027
    %v1060 = vadd.f32 %v905, %v1028
    %v1061 = vadd.f32 %v907, %v1029
    %v1062 = vadd.f32 %v909, %v1030
    %v1063 = vadd.f32 %v913, %v1031
    %v1064 = vadd.f32 %v915, %v1032
    %v1065 = vadd.f32 %v917, %v1033
    %v1066 = vadd.f32 %v919, %v1034
    %v1067 = vadd.f32 %v923, %v1035
    %v1068 = vadd.f32 %v925, %v1036
    %v1069 = vadd.f32 %v927, %v1037
    %v1070 = vadd.f32 %v929, %v1038
    %v1071 = vadd.f32 %v933, %v1039
    %v1072 = vadd.f32 %v935, %v1040
    %v1073 = vadd.f32 %v937, %v1041
    %v1074 = vadd.f32 %v939, %v1042
    %v1075 = vadd.f32 %v943, %v1043
    %v1076 = vadd.f32 %v945, %v1044
    %v1077 = vadd.f32 %v947, %v1045
    %v1078 = vadd.f32 %v949, %v1046
    %v1079 = vmul.f32 %v1047, 0.7978846
    %v1080 = vmul.f32 %v1048, 0.7978846
    %v1081 = vmul.f32 %v1049, 0.7978846
    %v1082 = vmul.f32 %v1050, 0.7978846
    %v1083 = vmul.f32 %v1051, 0.7978846
    %v1084 = vmul.f32 %v1052, 0.7978846
    %v1085 = vmul.f32 %v1053, 0.7978846
    %v1086 = vmul.f32 %v1054, 0.7978846
    %v1087 = vmul.f32 %v1055, 0.7978846
    %v1088 = vmul.f32 %v1056, 0.7978846
    %v1089 = vmul.f32 %v1057, 0.7978846
    %v1090 = vmul.f32 %v1058, 0.7978846
    %v1091 = vmul.f32 %v1059, 0.7978846
    %v1092 = vmul.f32 %v1060, 0.7978846
    %v1093 = vmul.f32 %v1061, 0.7978846
    %v1094 = vmul.f32 %v1062, 0.7978846
    %v1095 = vmul.f32 %v1063, 0.7978846
    %v1096 = vmul.f32 %v1064, 0.7978846
    %v1097 = vmul.f32 %v1065, 0.7978846
    %v1098 = vmul.f32 %v1066, 0.7978846
    %v1099 = vmul.f32 %v1067, 0.7978846
    %v1100 = vmul.f32 %v1068, 0.7978846
    %v1101 = vmul.f32 %v1069, 0.7978846
    %v1102 = vmul.f32 %v1070, 0.7978846
    %v1103 = vmul.f32 %v1071, 0.7978846
    %v1104 = vmul.f32 %v1072, 0.7978846
    %v1105 = vmul.f32 %v1073, 0.7978846
    %v1106 = vmul.f32 %v1074, 0.7978846
    %v1107 = vmul.f32 %v1075, 0.7978846
    %v1108 = vmul.f32 %v1076, 0.7978846
    %v1109 = vmul.f32 %v1077, 0.7978846
    %v1110 = vmul.f32 %v1078, 0.7978846
    %v1111 = vtanh.pop %v1079
    %v1112 = vtanh.pop %v1080
    %v1113 = vtanh.pop %v1081
    %v1114 = vtanh.pop %v1082
    %v1115 = vtanh.pop %v1083
    %v1116 = vtanh.pop %v1084
    %v1117 = vtanh.pop %v1085
    %v1118 = vtanh.pop %v1086
    %v1119 = vtanh.pop %v1087
    %v1120 = vtanh.pop %v1088
    %v1121 = vtanh.pop %v1089
    %v1122 = vtanh.pop %v1090
    %v1123 = vtanh.pop %v1091
    %v1124 = vtanh.pop %v1092
    %v1125 = vtanh.pop %v1093
    %v1126 = vtanh.pop %v1094
    %v1127 = vtanh.pop %v1095
    %v1128 = vtanh.pop %v1096
    %v1129 = vtanh.pop %v1097
    %v1130 = vtanh.pop %v1098
    %v1131 = vtanh.pop %v1099
    %v1132 = vtanh.pop %v1100
    %v1133 = vtanh.pop %v1101
    %v1134 = vtanh.pop %v1102
    %v1135 = vtanh.pop %v1103
    %v1136 = vtanh.pop %v1104
    %v1137 = vtanh.pop %v1105
    %v1138 = vtanh.pop %v1106
    %v1139 = vtanh.pop %v1107
    %v1140 = vtanh.pop %v1108
    %v1141 = vtanh.pop %v1109
    %v1142 = vtanh.pop %v1110
    %v1143 = vadd.f32 %v1111, 1.0
    %v1144 = vadd.f32 %v1112, 1.0
    %v1145 = vadd.f32 %v1113, 1.0
    %v1146 = vadd.f32 %v1114, 1.0
    %v1147 = vadd.f32 %v1115, 1.0
    %v1148 = vadd.f32 %v1116, 1.0
    %v1149 = vadd.f32 %v1117, 1.0
    %v1150 = vadd.f32 %v1118, 1.0
    %v1151 = vadd.f32 %v1119, 1.0
    %v1152 = vadd.f32 %v1120, 1.0
    %v1153 = vadd.f32 %v1121, 1.0
    %v1154 = vadd.f32 %v1122, 1.0
    %v1155 = vadd.f32 %v1123, 1.0
    %v1156 = vadd.f32 %v1124, 1.0
    %v1157 = vadd.f32 %v1125, 1.0
    %v1158 = vadd.f32 %v1126, 1.0
    %v1159 = vadd.f32 %v1127, 1.0
    %v1160 = vadd.f32 %v1128, 1.0
    %v1161 = vadd.f32 %v1129, 1.0
    %v1162 = vadd.f32 %v1130, 1.0
    %v1163 = vadd.f32 %v1131, 1.0
    %v1164 = vadd.f32 %v1132, 1.0
    %v1165 = vadd.f32 %v1133, 1.0
    %v1166 = vadd.f32 %v1134, 1.0
    %v1167 = vadd.f32 %v1135, 1.0
    %v1168 = vadd.f32 %v1136, 1.0
    %v1169 = vadd.f32 %v1137, 1.0
    %v1170 = vadd.f32 %v1138, 1.0
    %v1171 = vadd.f32 %v1139, 1.0
    %v1172 = vadd.f32 %v1140, 1.0
    %v1173 = vadd.f32 %v1141, 1.0
    %v1174 = vadd.f32 %v1142, 1.0
    %v1175 = vmul.f32 %v1143, 0.5
    %v1176 = vmul.f32 %v1144, 0.5
    %v1177 = vmul.f32 %v1145, 0.5
    %v1178 = vmul.f32 %v1146, 0.5
    %v1179 = vmul.f32 %v1147, 0.5
    %v1180 = vmul.f32 %v1148, 0.5
    %v1181 = vmul.f32 %v1149, 0.5
    %v1182 = vmul.f32 %v1150, 0.5
    %v1183 = vmul.f32 %v1151, 0.5
    %v1184 = vmul.f32 %v1152, 0.5
    %v1185 = vmul.f32 %v1153, 0.5
    %v1186 = vmul.f32 %v1154, 0.5
    %v1187 = vmul.f32 %v1155, 0.5
    %v1188 = vmul.f32 %v1156, 0.5
    %v1189 = vmul.f32 %v1157, 0.5
    %v1190 = vmul.f32 %v1158, 0.5
    %v1191 = vmul.f32 %v1159, 0.5
    %v1192 = vmul.f32 %v1160, 0.5
    %v1193 = vmul.f32 %v1161, 0.5
    %v1194 = vmul.f32 %v1162, 0.5
    %v1195 = vmul.f32 %v1163, 0.5
    %v1196 = vmul.f32 %v1164, 0.5
    %v1197 = vmul.f32 %v1165, 0.5
    %v1198 = vmul.f32 %v1166, 0.5
    %v1199 = vmul.f32 %v1167, 0.5
    %v1200 = vmul.f32 %v1168, 0.5
    %v1201 = vmul.f32 %v1169, 0.5
    %v1202 = vmul.f32 %v1170, 0.5
    %v1203 = vmul.f32 %v1171, 0.5
    %v1204 = vmul.f32 %v1172, 0.5
    %v1205 = vmul.f32 %v1173, 0.5
    %v1206 = vmul.f32 %v1174, 0.5
    %v1207 = vmul.f32 %v873, %v1175
    %v1208 = vmul.f32 %v875, %v1176
    %v1209 = vmul.f32 %v877, %v1177
    %v1210 = vmul.f32 %v879, %v1178
    %v1211 = vmul.f32 %v883, %v1179
    %v1212 = vmul.f32 %v885, %v1180
    %v1213 = vmul.f32 %v887, %v1181
    %v1214 = vmul.f32 %v889, %v1182
    %v1215 = vmul.f32 %v893, %v1183
    %v1216 = vmul.f32 %v895, %v1184
    %v1217 = vmul.f32 %v897, %v1185
    %v1218 = vmul.f32 %v899, %v1186
    %v1219 = vmul.f32 %v903, %v1187
    %v1220 = vmul.f32 %v905, %v1188
    %v1221 = vmul.f32 %v907, %v1189
    %v1222 = vmul.f32 %v909, %v1190
    %v1223 = vmul.f32 %v913, %v1191
    %v1224 = vmul.f32 %v915, %v1192
    %v1225 = vmul.f32 %v917, %v1193
    %v1226 = vmul.f32 %v919, %v1194
    %v1227 = vmul.f32 %v923, %v1195
    %v1228 = vmul.f32 %v925, %v1196
    %v1229 = vmul.f32 %v927, %v1197
    %v1230 = vmul.f32 %v929, %v1198
    %v1231 = vmul.f32 %v933, %v1199
    %v1232 = vmul.f32 %v935, %v1200
    %v1233 = vmul.f32 %v937, %v1201
    %v1234 = vmul.f32 %v939, %v1202
    %v1235 = vmul.f32 %v943, %v1203
    %v1236 = vmul.f32 %v945, %v1204
    %v1237 = vmul.f32 %v947, %v1205
    %v1238 = vmul.f32 %v949, %v1206
    %v1239 = vpack.c.bf16 %v1209, %v1207
    %v1240 = vpack.c.bf16 %v1210, %v1208
    %v1241 = vpack.c.bf16 %v1213, %v1211
    %v1242 = vpack.c.bf16 %v1214, %v1212
    %v1243 = vpack.c.bf16 %v1217, %v1215
    %v1244 = vpack.c.bf16 %v1218, %v1216
    %v1245 = vpack.c.bf16 %v1221, %v1219
    %v1246 = vpack.c.bf16 %v1222, %v1220
    %v1247 = vpack.c.bf16 %v1225, %v1223
    %v1248 = vpack.c.bf16 %v1226, %v1224
    %v1249 = vpack.c.bf16 %v1229, %v1227
    %v1250 = vpack.c.bf16 %v1230, %v1228
    %v1251 = vpack.c.bf16 %v1233, %v1231
    %v1252 = vpack.c.bf16 %v1234, %v1232
    %v1253 = vpack.c.bf16 %v1237, %v1235
    %v1254 = vpack.c.bf16 %v1238, %v1236
    %v1255 = vlaneseq
    %v1256 = vshrl.u32 %v1255, 7
    %v1257 = vsub.s32 0, %v1256
    %v1258 = vrot.slane %v149, %v1257
    %v1291 = vunpack.c.l.b16 %v79
    %v1292 = vunpack.c.l.b16 %v80
    %v1293 = vunpack.c.l.b16 %v81
    %v1294 = vunpack.c.l.b16 %v82
    %v1295 = vunpack.c.l.b16 %v83
    %v1296 = vunpack.c.l.b16 %v84
    %v1297 = vunpack.c.l.b16 %v85
    %v1298 = vunpack.c.l.b16 %v86
    %v1299 = vunpack.c.l.b16 %v87
    %v1300 = vunpack.c.l.b16 %v88
    %v1301 = vunpack.c.l.b16 %v89
    %v1302 = vunpack.c.l.b16 %v90
    %v1303 = vunpack.c.l.b16 %v91
    %v1304 = vunpack.c.l.b16 %v92
    %v1305 = vunpack.c.l.b16 %v93
    %v1306 = vunpack.c.l.b16 %v94
    %v1307 = vunpack.c.l.b16 %v95
    %v1308 = vunpack.c.l.b16 %v96
    %v1309 = vunpack.c.l.b16 %v97
    %v1310 = vunpack.c.l.b16 %v98
    %v1311 = vunpack.c.l.b16 %v99
    %v1312 = vunpack.c.l.b16 %v100
    %v1313 = vunpack.c.l.b16 %v101
    %v1314 = vunpack.c.l.b16 %v102
    %v1315 = vunpack.c.l.b16 %v103
    %v1316 = vunpack.c.l.b16 %v104
    %v1317 = vunpack.c.l.b16 %v105
    %v1318 = vunpack.c.l.b16 %v106
    %v1319 = vunpack.c.l.b16 %v107
    %v1320 = vunpack.c.l.b16 %v108
    %v1321 = vunpack.c.l.b16 %v109
    %v1322 = vunpack.c.l.b16 %v110
    %v1323 = vpack.c.b16 %v1292, %v1291
    %v1324 = vpack.c.b16 %v1294, %v1293
    %v1325 = vpack.c.b16 %v1296, %v1295
    %v1326 = vpack.c.b16 %v1298, %v1297
    %v1327 = vpack.c.b16 %v1300, %v1299
    %v1328 = vpack.c.b16 %v1302, %v1301
    %v1329 = vpack.c.b16 %v1304, %v1303
    %v1330 = vpack.c.b16 %v1306, %v1305
    %v1331 = vpack.c.b16 %v1308, %v1307
    %v1332 = vpack.c.b16 %v1310, %v1309
    %v1333 = vpack.c.b16 %v1312, %v1311
    %v1334 = vpack.c.b16 %v1314, %v1313
    %v1335 = vpack.c.b16 %v1316, %v1315
    %v1336 = vpack.c.b16 %v1318, %v1317
    %v1337 = vpack.c.b16 %v1320, %v1319
    %v1338 = vpack.c.b16 %v1322, %v1321
    %1355 = vmatprep.subr.bf16.mxu0 0
    %1356 = vmatpush1.bf16.msra.mxu0 %v1323
    %1357 = vmatprep.subr.bf16.mxu0 0
    %1358 = vmatpush1.bf16.msra.mxu0 %v1324
    %1359 = vmatprep.subr.bf16.mxu0 0
    %1360 = vmatpush1.bf16.msra.mxu0 %v1325
    %1361 = vmatprep.subr.bf16.mxu0 0
    %1362 = vmatpush1.bf16.msra.mxu0 %v1326
    %1363 = vmatprep.subr.bf16.mxu0 0
    %1364 = vmatpush1.bf16.msra.mxu0 %v1327
    %1365 = vmatprep.subr.bf16.mxu0 0
    %1366 = vmatpush1.bf16.msra.mxu0 %v1328
    %1367 = vmatprep.subr.bf16.mxu0 0
    %1368 = vmatpush1.bf16.msra.mxu0 %v1329
    %1369 = vmatprep.subr.bf16.mxu0 0
    %1370 = vmatpush1.bf16.msra.mxu0 %v1330
    %1371 = vmatprep.subr.bf16.mxu0 0
    %1372 = vmatpush1.bf16.msra.mxu0 %v1331
    %1373 = vmatprep.subr.bf16.mxu0 0
    %1374 = vmatpush1.bf16.msra.mxu0 %v1332
    %1375 = vmatprep.subr.bf16.mxu0 0
    %1376 = vmatpush1.bf16.msra.mxu0 %v1333
    %1377 = vmatprep.subr.bf16.mxu0 0
    %1378 = vmatpush1.bf16.msra.mxu0 %v1334
    %1379 = vmatprep.subr.bf16.mxu0 0
    %1380 = vmatpush1.bf16.msra.mxu0 %v1335
    %1381 = vmatprep.subr.bf16.mxu0 0
    %1382 = vmatpush1.bf16.msra.mxu0 %v1336
    %1383 = vmatprep.subr.bf16.mxu0 0
    %1384 = vmatpush1.bf16.msra.mxu0 %v1337
    %1385 = vmatprep.subr.bf16.mxu0 0
    %1386 = vmatpush1.bf16.msra.mxu0 %v1338
    %1387 = vmatprep.mubr.bf16.mxu0 %v1240
    %1388 = vmatmul.mubr.bf16.gmra.mrb[0].mxu0 %v1239
    %v1389 = vpop.f32.mrb[0].mxu0
    %v1390 = vadd.f32 %v1258, %v1389
    %v1391 = vpop.f32.mrb[0].mxu0
    %v1392 = vpop.f32.mrb[0].mxu0
    %v1393 = vadd.f32 %v1258, %v1392
    %v1394 = vpop.f32.mrb[0].mxu0
    %1395 = vmatprep.mubr.bf16.mxu0 %v1242
    %1396 = vmatmul.mubr.bf16.gmra.mrb[0].mxu0 %v1241
    %v1397 = vpop.f32.mrb[0].mxu0
    %v1398 = vadd.f32 %v1258, %v1397
    %v1399 = vpop.f32.mrb[0].mxu0
    %v1400 = vpop.f32.mrb[0].mxu0
    %v1401 = vadd.f32 %v1258, %v1400
    %v1402 = vpop.f32.mrb[0].mxu0
    %1403 = vmatprep.mubr.bf16.mxu0 %v1244
    %1404 = vmatmul.mubr.bf16.gmra.mrb[0].mxu0 %v1243
    %v1405 = vpop.f32.mrb[0].mxu0
    %v1406 = vadd.f32 %v1258, %v1405
    %v1407 = vpop.f32.mrb[0].mxu0
    %v1408 = vpop.f32.mrb[0].mxu0
    %v1409 = vadd.f32 %v1258, %v1408
    %v1410 = vpop.f32.mrb[0].mxu0
    %1411 = vmatprep.mubr.bf16.mxu0 %v1246
    %1412 = vmatmul.mubr.bf16.gmra.mrb[0].mxu0 %v1245
    %v1413 = vpop.f32.mrb[0].mxu0
    %v1414 = vadd.f32 %v1258, %v1413
    %v1415 = vpop.f32.mrb[0].mxu0
    %v1416 = vpop.f32.mrb[0].mxu0
    %v1417 = vadd.f32 %v1258, %v1416
    %v1418 = vpop.f32.mrb[0].mxu0
    %1419 = vmatprep.mubr.bf16.mxu0 %v1248
    %1420 = vmatmul.mubr.bf16.gmra.mrb[0].mxu0 %v1247
    %v1421 = vpop.f32.mrb[0].mxu0
    %v1422 = vadd.f32 %v1258, %v1421
    %v1423 = vpop.f32.mrb[0].mxu0
    %v1424 = vpop.f32.mrb[0].mxu0
    %v1425 = vadd.f32 %v1258, %v1424
    %v1426 = vpop.f32.mrb[0].mxu0
    %1427 = vmatprep.mubr.bf16.mxu0 %v1250
    %1428 = vmatmul.mubr.bf16.gmra.mrb[0].mxu0 %v1249
    %v1429 = vpop.f32.mrb[0].mxu0
    %v1430 = vadd.f32 %v1258, %v1429
    %v1431 = vpop.f32.mrb[0].mxu0
    %v1432 = vpop.f32.mrb[0].mxu0
    %v1433 = vadd.f32 %v1258, %v1432
    %v1434 = vpop.f32.mrb[0].mxu0
    %1435 = vmatprep.mubr.bf16.mxu0 %v1252
    %1436 = vmatmul.mubr.bf16.gmra.mrb[0].mxu0 %v1251
    %v1437 = vpop.f32.mrb[0].mxu0
    %v1438 = vadd.f32 %v1258, %v1437
    %v1439 = vpop.f32.mrb[0].mxu0
    %v1440 = vpop.f32.mrb[0].mxu0
    %v1441 = vadd.f32 %v1258, %v1440
    %v1442 = vpop.f32.mrb[0].mxu0
    %1443 = vmatprep.mubr.bf16.mxu0 %v1254
    %1444 = vmatmul.mubr.bf16.gmra.mrb[0].mxu0 %v1253
    %v1445 = vpop.f32.mrb[0].mxu0
    %v1446 = vadd.f32 %v1258, %v1445
    %v1447 = vpop.f32.mrb[0].mxu0
    %v1448 = vpop.f32.mrb[0].mxu0
    %v1449 = vadd.f32 %v1258, %v1448
    %v1450 = vpop.f32.mrb[0].mxu0
    %1451 = vdwg.mxu0
    %v1452 = vadd.f32 %v723, %v1390
    %v1453 = vadd.f32 %v724, %v1393
    %v1454 = vadd.f32 %v725, %v1398
    %v1455 = vadd.f32 %v726, %v1401
    %v1456 = vadd.f32 %v727, %v1406
    %v1457 = vadd.f32 %v728, %v1409
    %v1458 = vadd.f32 %v729, %v1414
    %v1459 = vadd.f32 %v730, %v1417
    %v1460 = vadd.f32 %v731, %v1422
    %v1461 = vadd.f32 %v732, %v1425
    %v1462 = vadd.f32 %v733, %v1430
    %v1463 = vadd.f32 %v734, %v1433
    %v1464 = vadd.f32 %v735, %v1438
    %v1465 = vadd.f32 %v736, %v1441
    %v1466 = vadd.f32 %v737, %v1446
    %v1467 = vadd.f32 %v738, %v1449
    %1468 = vadd.xlane.f32.xlu0 %v1452
    %v1469 = vpop.xlane.xlu0 %1468
    %1470 = vadd.xlane.f32.xlu0 %v1453
    %v1471 = vpop.xlane.xlu0 %1470
    %1472 = vadd.xlane.f32.xlu0 %v1454
    %v1473 = vpop.xlane.xlu0 %1472
    %1474 = vadd.xlane.f32.xlu0 %v1455
    %v1475 = vpop.xlane.xlu0 %1474
    %1476 = vadd.xlane.f32.xlu0 %v1456
    %v1477 = vpop.xlane.xlu0 %1476
    %1478 = vadd.xlane.f32.xlu0 %v1457
    %v1479 = vpop.xlane.xlu0 %1478
    %1480 = vadd.xlane.f32.xlu0 %v1458
    %v1481 = vpop.xlane.xlu0 %1480
    %1482 = vadd.xlane.f32.xlu0 %v1459
    %v1483 = vpop.xlane.xlu0 %1482
    %1484 = vadd.xlane.f32.xlu0 %v1460
    %v1485 = vpop.xlane.xlu0 %1484
    %1486 = vadd.xlane.f32.xlu0 %v1461
    %v1487 = vpop.xlane.xlu0 %1486
    %1488 = vadd.xlane.f32.xlu0 %v1462
    %v1489 = vpop.xlane.xlu0 %1488
    %1490 = vadd.xlane.f32.xlu0 %v1463
    %v1491 = vpop.xlane.xlu0 %1490
    %1492 = vadd.xlane.f32.xlu0 %v1464
    %v1493 = vpop.xlane.xlu0 %1492
    %1494 = vadd.xlane.f32.xlu0 %v1465
    %v1495 = vpop.xlane.xlu0 %1494
    %1496 = vadd.xlane.f32.xlu0 %v1466
    %v1497 = vpop.xlane.xlu0 %1496
    %1498 = vadd.xlane.f32.xlu0 %v1467
    %v1499 = vpop.xlane.xlu0 %1498
    %v1500 = vmul.f32 %v1469, %v554
    %v1501 = vmul.f32 %v1471, %v554
    %v1502 = vmul.f32 %v1473, %v554
    %v1503 = vmul.f32 %v1475, %v554
    %v1504 = vmul.f32 %v1477, %v554
    %v1505 = vmul.f32 %v1479, %v554
    %v1506 = vmul.f32 %v1481, %v554
    %v1507 = vmul.f32 %v1483, %v554
    %v1508 = vmul.f32 %v1485, %v554
    %v1509 = vmul.f32 %v1487, %v554
    %v1510 = vmul.f32 %v1489, %v554
    %v1511 = vmul.f32 %v1491, %v554
    %v1512 = vmul.f32 %v1493, %v554
    %v1513 = vmul.f32 %v1495, %v554
    %v1514 = vmul.f32 %v1497, %v554
    %v1515 = vmul.f32 %v1499, %v554
    %v1516 = vsub.f32 %v1452, %v1500
    %v1517 = vsub.f32 %v1453, %v1501
    %v1518 = vsub.f32 %v1454, %v1502
    %v1519 = vsub.f32 %v1455, %v1503
    %v1520 = vsub.f32 %v1456, %v1504
    %v1521 = vsub.f32 %v1457, %v1505
    %v1522 = vsub.f32 %v1458, %v1506
    %v1523 = vsub.f32 %v1459, %v1507
    %v1524 = vsub.f32 %v1460, %v1508
    %v1525 = vsub.f32 %v1461, %v1509
    %v1526 = vsub.f32 %v1462, %v1510
    %v1527 = vsub.f32 %v1463, %v1511
    %v1528 = vsub.f32 %v1464, %v1512
    %v1529 = vsub.f32 %v1465, %v1513
    %v1530 = vsub.f32 %v1466, %v1514
    %v1531 = vsub.f32 %v1467, %v1515
    %v1532 = vmul.f32 %v1516, %v1516
    %v1533 = vmul.f32 %v1517, %v1517
    %v1534 = vmul.f32 %v1518, %v1518
    %v1535 = vmul.f32 %v1519, %v1519
    %v1536 = vmul.f32 %v1520, %v1520
    %v1537 = vmul.f32 %v1521, %v1521
    %v1538 = vmul.f32 %v1522, %v1522
    %v1539 = vmul.f32 %v1523, %v1523
    %v1540 = vmul.f32 %v1524, %v1524
    %v1541 = vmul.f32 %v1525, %v1525
    %v1542 = vmul.f32 %v1526, %v1526
    %v1543 = vmul.f32 %v1527, %v1527
    %v1544 = vmul.f32 %v1528, %v1528
    %v1545 = vmul.f32 %v1529, %v1529
    %v1546 = vmul.f32 %v1530, %v1530
    %v1547 = vmul.f32 %v1531, %v1531
    %1548 = vadd.xlane.f32.xlu0 %v1532
    %v1549 = vpop.xlane.xlu0 %1548
    %1550 = vadd.xlane.f32.xlu0 %v1533
    %v1551 = vpop.xlane.xlu0 %1550
    %1552 = vadd.xlane.f32.xlu0 %v1534
    %v1553 = vpop.xlane.xlu0 %1552
    %1554 = vadd.xlane.f32.xlu0 %v1535
    %v1555 = vpop.xlane.xlu0 %1554
    %1556 = vadd.xlane.f32.xlu0 %v1536
    %v1557 = vpop.xlane.xlu0 %1556
    %1558 = vadd.xlane.f32.xlu0 %v1537
    %v1559 = vpop.xlane.xlu0 %1558
    %1560 = vadd.xlane.f32.xlu0 %v1538
    %v1561 = vpop.xlane.xlu0 %1560
    %1562 = vadd.xlane.f32.xlu0 %v1539
    %v1563 = vpop.xlane.xlu0 %1562
    %1564 = vadd.xlane.f32.xlu0 %v1540
    %v1565 = vpop.xlane.xlu0 %1564
    %1566 = vadd.xlane.f32.xlu0 %v1541
    %v1567 = vpop.xlane.xlu0 %1566
    %1568 = vadd.xlane.f32.xlu0 %v1542
    %v1569 = vpop.xlane.xlu0 %1568
    %1570 = vadd.xlane.f32.xlu0 %v1543
    %v1571 = vpop.xlane.xlu0 %1570
    %1572 = vadd.xlane.f32.xlu0 %v1544
    %v1573 = vpop.xlane.xlu0 %1572
    %1574 = vadd.xlane.f32.xlu0 %v1545
    %v1575 = vpop.xlane.xlu0 %1574
    %1576 = vadd.xlane.f32.xlu0 %v1546
    %v1577 = vpop.xlane.xlu0 %1576
    %1578 = vadd.xlane.f32.xlu0 %v1547
    %v1579 = vpop.xlane.xlu0 %1578
    %v1580 = vmul.f32 %v1549, %v554
    %v1581 = vmul.f32 %v1551, %v554
    %v1582 = vmul.f32 %v1553, %v554
    %v1583 = vmul.f32 %v1555, %v554
    %v1584 = vmul.f32 %v1557, %v554
    %v1585 = vmul.f32 %v1559, %v554
    %v1586 = vmul.f32 %v1561, %v554
    %v1587 = vmul.f32 %v1563, %v554
    %v1588 = vmul.f32 %v1565, %v554
    %v1589 = vmul.f32 %v1567, %v554
    %v1590 = vmul.f32 %v1569, %v554
    %v1591 = vmul.f32 %v1571, %v554
    %v1592 = vmul.f32 %v1573, %v554
    %v1593 = vmul.f32 %v1575, %v554
    %v1594 = vmul.f32 %v1577, %v554
    %v1595 = vmul.f32 %v1579, %v554
    %v1596 = vadd.f32 %v1580, 1e-12
    %v1597 = vadd.f32 %v1581, 1e-12
    %v1598 = vadd.f32 %v1582, 1e-12
    %v1599 = vadd.f32 %v1583, 1e-12
    %v1600 = vadd.f32 %v1584, 1e-12
    %v1601 = vadd.f32 %v1585, 1e-12
    %v1602 = vadd.f32 %v1586, 1e-12
    %v1603 = vadd.f32 %v1587, 1e-12
    %v1604 = vadd.f32 %v1588, 1e-12
    %v1605 = vadd.f32 %v1589, 1e-12
    %v1606 = vadd.f32 %v1590, 1e-12
    %v1607 = vadd.f32 %v1591, 1e-12
    %v1608 = vadd.f32 %v1592, 1e-12
    %v1609 = vadd.f32 %v1593, 1e-12
    %v1610 = vadd.f32 %v1594, 1e-12
    %v1611 = vadd.f32 %v1595, 1e-12
    %v1612 = vrsqrt.pop %v1596
    %v1613 = vrsqrt.pop %v1597
    %v1614 = vrsqrt.pop %v1598
    %v1615 = vrsqrt.pop %v1599
    %v1616 = vrsqrt.pop %v1600
    %v1617 = vrsqrt.pop %v1601
    %v1618 = vrsqrt.pop %v1602
    %v1619 = vrsqrt.pop %v1603
    %v1620 = vrsqrt.pop %v1604
    %v1621 = vrsqrt.pop %v1605
    %v1622 = vrsqrt.pop %v1606
    %v1623 = vrsqrt.pop %v1607
    %v1624 = vrsqrt.pop %v1608
    %v1625 = vrsqrt.pop %v1609
    %v1626 = vrsqrt.pop %v1610
    %v1627 = vrsqrt.pop %v1611
    %v1628 = vmul.f32 %v1516, %v1612
    %v1629 = vmul.f32 %v1517, %v1613
    %v1630 = vmul.f32 %v1518, %v1614
    %v1631 = vmul.f32 %v1519, %v1615
    %v1632 = vmul.f32 %v1520, %v1616
    %v1633 = vmul.f32 %v1521, %v1617
    %v1634 = vmul.f32 %v1522, %v1618
    %v1635 = vmul.f32 %v1523, %v1619
    %v1636 = vmul.f32 %v1524, %v1620
    %v1637 = vmul.f32 %v1525, %v1621
    %v1638 = vmul.f32 %v1526, %v1622
    %v1639 = vmul.f32 %v1527, %v1623
    %v1640 = vmul.f32 %v1528, %v1624
    %v1641 = vmul.f32 %v1529, %v1625
    %v1642 = vmul.f32 %v1530, %v1626
    %v1643 = vmul.f32 %v1531, %v1627
    %v1644 = vlaneseq
    %v1645 = vshrl.u32 %v1644, 7
    %v1646 = vsub.s32 0, %v1645
    %v1647 = vrot.slane %v147, %v1646
    %v1648 = vmul.f32 %v1628, %v1647
    %v1649 = vmul.f32 %v1629, %v1647
    %v1650 = vmul.f32 %v1630, %v1647
    %v1651 = vmul.f32 %v1631, %v1647
    %v1652 = vmul.f32 %v1632, %v1647
    %v1653 = vmul.f32 %v1633, %v1647
    %v1654 = vmul.f32 %v1634, %v1647
    %v1655 = vmul.f32 %v1635, %v1647
    %v1656 = vmul.f32 %v1636, %v1647
    %v1657 = vmul.f32 %v1637, %v1647
    %v1658 = vmul.f32 %v1638, %v1647
    %v1659 = vmul.f32 %v1639, %v1647
    %v1660 = vmul.f32 %v1640, %v1647
    %v1661 = vmul.f32 %v1641, %v1647
    %v1662 = vmul.f32 %v1642, %v1647
    %v1663 = vmul.f32 %v1643, %v1647
    %v1664 = vlaneseq
    %v1665 = vshrl.u32 %v1664, 7
    %v1666 = vsub.s32 0, %v1665
    %v1667 = vrot.slane %v148, %v1666
    %v1668 = vadd.f32 %v1648, %v1667
    %v1669 = vadd.f32 %v1649, %v1667
    %v1670 = vadd.f32 %v1650, %v1667
    %v1671 = vadd.f32 %v1651, %v1667
    %v1672 = vadd.f32 %v1652, %v1667
    %v1673 = vadd.f32 %v1653, %v1667
    %v1674 = vadd.f32 %v1654, %v1667
    %v1675 = vadd.f32 %v1655, %v1667
    %v1676 = vadd.f32 %v1656, %v1667
    %v1677 = vadd.f32 %v1657, %v1667
    %v1678 = vadd.f32 %v1658, %v1667
    %v1679 = vadd.f32 %v1659, %v1667
    %v1680 = vadd.f32 %v1660, %v1667
    %v1681 = vadd.f32 %v1661, %v1667
    %v1682 = vadd.f32 %v1662, %v1667
    %v1683 = vadd.f32 %v1663, %v1667
    %v1684 = vpack.c.bf16 %v1669, %v1668
    %v1685 = vpack.c.bf16 %v1671, %v1670
    %v1686 = vpack.c.bf16 %v1673, %v1672
    %v1687 = vpack.c.bf16 %v1675, %v1674
    %v1688 = vpack.c.bf16 %v1677, %v1676
    %v1689 = vpack.c.bf16 %v1679, %v1678
    %v1690 = vpack.c.bf16 %v1681, %v1680
    %v1691 = vpack.c.bf16 %v1683, %v1682
    %v1693 = vlaneseq
    %v1694 = vshrl.u32 %v1693, 7
    %v1695 = vsub.s32 0, %v1694
    %v1696 = vrot.slane %v152, %v1695
    %v1697 = vlaneseq
    %v1698 = vshrl.u32 %v1697, 7
    %v1699 = vsub.s32 1, %v1698
    %v1700 = vrot.slane %v152, %v1699
    %v1719 = vunpack.c.l.b16 %v127
    %v1720 = vunpack.c.h.b16 %v127
    %v1721 = vunpack.c.l.b16 %v128
    %v1722 = vunpack.c.h.b16 %v128
    %v1723 = vunpack.c.l.b16 %v129
    %v1724 = vunpack.c.h.b16 %v129
    %v1725 = vunpack.c.l.b16 %v130
    %v1726 = vunpack.c.h.b16 %v130
    %v1727 = vunpack.c.l.b16 %v131
    %v1728 = vunpack.c.h.b16 %v131
    %v1729 = vunpack.c.l.b16 %v132
    %v1730 = vunpack.c.h.b16 %v132
    %v1731 = vunpack.c.l.b16 %v133
    %v1732 = vunpack.c.h.b16 %v133
    %v1733 = vunpack.c.l.b16 %v134
    %v1734 = vunpack.c.h.b16 %v134
    %v1735 = vunpack.c.l.b16 %v135
    %v1736 = vunpack.c.h.b16 %v135
    %v1737 = vunpack.c.l.b16 %v136
    %v1738 = vunpack.c.h.b16 %v136
    %v1739 = vunpack.c.l.b16 %v137
    %v1740 = vunpack.c.h.b16 %v137
    %v1741 = vunpack.c.l.b16 %v138
    %v1742 = vunpack.c.h.b16 %v138
    %v1743 = vunpack.c.l.b16 %v139
    %v1744 = vunpack.c.h.b16 %v139
    %v1745 = vunpack.c.l.b16 %v140
    %v1746 = vunpack.c.h.b16 %v140
    %v1747 = vunpack.c.l.b16 %v141
    %v1748 = vunpack.c.h.b16 %v141
    %v1749 = vunpack.c.l.b16 %v142
    %v1750 = vunpack.c.h.b16 %v142
    %v1751 = vpack.c.b16 %v1721, %v1719
    %v1752 = vpack.c.b16 %v1722, %v1720
    %v1753 = vpack.c.b16 %v1725, %v1723
    %v1754 = vpack.c.b16 %v1726, %v1724
    %v1755 = vpack.c.b16 %v1729, %v1727
    %v1756 = vpack.c.b16 %v1730, %v1728
    %v1757 = vpack.c.b16 %v1733, %v1731
    %v1758 = vpack.c.b16 %v1734, %v1732
    %v1759 = vpack.c.b16 %v1737, %v1735
    %v1760 = vpack.c.b16 %v1738, %v1736
    %v1761 = vpack.c.b16 %v1741, %v1739
    %v1762 = vpack.c.b16 %v1742, %v1740
    %v1763 = vpack.c.b16 %v1745, %v1743
    %v1764 = vpack.c.b16 %v1746, %v1744
    %v1765 = vpack.c.b16 %v1749, %v1747
    %v1766 = vpack.c.b16 %v1750, %v1748
    %1783 = vmatprep.subr.bf16.mxu0 %v1752
    %1784 = vmatpush1.bf16.msra.mxu0 %v1751
    %1785 = vmatprep.subr.bf16.mxu0 %v1754
    %1786 = vmatpush1.bf16.msra.mxu0 %v1753
    %1787 = vmatprep.subr.bf16.mxu0 %v1756
    %1788 = vmatpush1.bf16.msra.mxu0 %v1755
    %1789 = vmatprep.subr.bf16.mxu0 %v1758
    %1790 = vmatpush1.bf16.msra.mxu0 %v1757
    %1791 = vmatprep.subr.bf16.mxu0 %v1760
    %1792 = vmatpush1.bf16.msra.mxu0 %v1759
    %1793 = vmatprep.subr.bf16.mxu0 %v1762
    %1794 = vmatpush1.bf16.msra.mxu0 %v1761
    %1795 = vmatprep.subr.bf16.mxu0 %v1764
    %1796 = vmatpush1.bf16.msra.mxu0 %v1763
    %1797 = vmatprep.subr.bf16.mxu0 %v1766
    %1798 = vmatpush1.bf16.msra.mxu0 %v1765
    %1799 = vmatprep.subr.bf16.mxu0 0
    %1800 = vmatpush1.bf16.msra.mxu0 0
    %1801 = vmatprep.subr.bf16.mxu0 0
    %1802 = vmatpush1.bf16.msra.mxu0 0
    %1803 = vmatprep.subr.bf16.mxu0 0
    %1804 = vmatpush1.bf16.msra.mxu0 0
    %1805 = vmatprep.subr.bf16.mxu0 0
    %1806 = vmatpush1.bf16.msra.mxu0 0
    %1807 = vmatprep.subr.bf16.mxu0 0
    %1808 = vmatpush1.bf16.msra.mxu0 0
    %1809 = vmatprep.subr.bf16.mxu0 0
    %1810 = vmatpush1.bf16.msra.mxu0 0
    %1811 = vmatprep.subr.bf16.mxu0 0
    %1812 = vmatpush1.bf16.msra.mxu0 0
    %1813 = vmatprep.subr.bf16.mxu0 0
    %1814 = vmatpush1.bf16.msra.mxu0 0
    %1815 = vmatprep.mubr.bf16.mxu0 0
    %1816 = vmatmul.mubr.bf16.gmra.mrb[0].mxu0 %v1684
    %v1817 = vpop.f32.mrb[0].mxu0
    %v1818 = vadd.f32 %v1696, %v1817
    %v1819 = vpop.f32.mrb[0].mxu0
    %v1820 = vadd.f32 %v1700, %v1819
    %v1821 = vpop.f32.mrb[0].mxu0
    %v1822 = vadd.f32 %v1696, %v1821
    %v1823 = vpop.f32.mrb[0].mxu0
    %v1824 = vadd.f32 %v1700, %v1823
    %1825 = vmatprep.mubr.bf16.mxu0 0
    %1826 = vmatmul.mubr.bf16.gmra.mrb[0].mxu0 %v1685
    %v1827 = vpop.f32.mrb[0].mxu0
    %v1828 = vadd.f32 %v1696, %v1827
    %v1829 = vpop.f32.mrb[0].mxu0
    %v1830 = vadd.f32 %v1700, %v1829
    %v1831 = vpop.f32.mrb[0].mxu0
    %v1832 = vadd.f32 %v1696, %v1831
    %v1833 = vpop.f32.mrb[0].mxu0
    %v1834 = vadd.f32 %v1700, %v1833
    %1835 = vmatprep.mubr.bf16.mxu0 0
    %1836 = vmatmul.mubr.bf16.gmra.mrb[0].mxu0 %v1686
    %v1837 = vpop.f32.mrb[0].mxu0
    %v1838 = vadd.f32 %v1696, %v1837
    %v1839 = vpop.f32.mrb[0].mxu0
    %v1840 = vadd.f32 %v1700, %v1839
    %v1841 = vpop.f32.mrb[0].mxu0
    %v1842 = vadd.f32 %v1696, %v1841
    %v1843 = vpop.f32.mrb[0].mxu0
    %v1844 = vadd.f32 %v1700, %v1843
    %1845 = vmatprep.mubr.bf16.mxu0 0
    %1846 = vmatmul.mubr.bf16.gmra.mrb[0].mxu0 %v1687
    %v1847 = vpop.f32.mrb[0].mxu0
    %v1848 = vadd.f32 %v1696, %v1847
    %v1849 = vpop.f32.mrb[0].mxu0
    %v1850 = vadd.f32 %v1700, %v1849
    %v1851 = vpop.f32.mrb[0].mxu0
    %v1852 = vadd.f32 %v1696, %v1851
    %v1853 = vpop.f32.mrb[0].mxu0
    %v1854 = vadd.f32 %v1700, %v1853
    %1855 = vmatprep.mubr.bf16.mxu0 0
    %1856 = vmatmul.mubr.bf16.gmra.mrb[0].mxu0 %v1688
    %v1857 = vpop.f32.mrb[0].mxu0
    %v1858 = vadd.f32 %v1696, %v1857
    %v1859 = vpop.f32.mrb[0].mxu0
    %v1860 = vadd.f32 %v1700, %v1859
    %v1861 = vpop.f32.mrb[0].mxu0
    %v1862 = vadd.f32 %v1696, %v1861
    %v1863 = vpop.f32.mrb[0].mxu0
    %v1864 = vadd.f32 %v1700, %v1863
    %1865 = vmatprep.mubr.bf16.mxu0 0
    %1866 = vmatmul.mubr.bf16.gmra.mrb[0].mxu0 %v1689
    %v1867 = vpop.f32.mrb[0].mxu0
    %v1868 = vadd.f32 %v1696, %v1867
    %v1869 = vpop.f32.mrb[0].mxu0
    %v1870 = vadd.f32 %v1700, %v1869
    %v1871 = vpop.f32.mrb[0].mxu0
    %v1872 = vadd.f32 %v1696, %v1871
    %v1873 = vpop.f32.mrb[0].mxu0
    %v1874 = vadd.f32 %v1700, %v1873
    %1875 = vmatprep.mubr.bf16.mxu0 0
    %1876 = vmatmul.mubr.bf16.gmra.mrb[0].mxu0 %v1690
    %v1877 = vpop.f32.mrb[0].mxu0
    %v1878 = vadd.f32 %v1696, %v1877
    %v1879 = vpop.f32.mrb[0].mxu0
    %v1880 = vadd.f32 %v1700, %v1879
    %v1881 = vpop.f32.mrb[0].mxu0
    %v1882 = vadd.f32 %v1696, %v1881
    %v1883 = vpop.f32.mrb[0].mxu0
    %v1884 = vadd.f32 %v1700, %v1883
    %1885 = vmatprep.mubr.bf16.mxu0 0
    %1886 = vmatmul.mubr.bf16.gmra.mrb[0].mxu0 %v1691
    %v1887 = vpop.f32.mrb[0].mxu0
    %v1888 = vadd.f32 %v1696, %v1887
    %v1889 = vpop.f32.mrb[0].mxu0
    %v1890 = vadd.f32 %v1700, %v1889
    %v1891 = vpop.f32.mrb[0].mxu0
    %v1892 = vadd.f32 %v1696, %v1891
    %v1893 = vpop.f32.mrb[0].mxu0
    %v1894 = vadd.f32 %v1700, %v1893
    %1895 = vdwg.mxu0
    %v1896 = vmax.f32 %v1818, %v1820
    %1897 = vmax.xlane.f32.xlu0 %v1896
    %v1898 = vpop.xlane.xlu0 %1897
    %v1899 = vmax.f32 %v1822, %v1824
    %1900 = vmax.xlane.f32.xlu0 %v1899
    %v1901 = vpop.xlane.xlu0 %1900
    %v1902 = vmax.f32 %v1828, %v1830
    %1903 = vmax.xlane.f32.xlu0 %v1902
    %v1904 = vpop.xlane.xlu0 %1903
    %v1905 = vmax.f32 %v1832, %v1834
    %1906 = vmax.xlane.f32.xlu0 %v1905
    %v1907 = vpop.xlane.xlu0 %1906
    %v1908 = vmax.f32 %v1838, %v1840
    %1909 = vmax.xlane.f32.xlu0 %v1908
    %v1910 = vpop.xlane.xlu0 %1909
    %v1911 = vmax.f32 %v1842, %v1844
    %1912 = vmax.xlane.f32.xlu0 %v1911
    %v1913 = vpop.xlane.xlu0 %1912
    %v1914 = vmax.f32 %v1848, %v1850
    %1915 = vmax.xlane.f32.xlu0 %v1914
    %v1916 = vpop.xlane.xlu0 %1915
    %v1917 = vmax.f32 %v1852, %v1854
    %1918 = vmax.xlane.f32.xlu0 %v1917
    %v1919 = vpop.xlane.xlu0 %1918
    %v1920 = vmax.f32 %v1858, %v1860
    %1921 = vmax.xlane.f32.xlu0 %v1920
    %v1922 = vpop.xlane.xlu0 %1921
    %v1923 = vmax.f32 %v1862, %v1864
    %1924 = vmax.xlane.f32.xlu0 %v1923
    %v1925 = vpop.xlane.xlu0 %1924
    %v1926 = vmax.f32 %v1868, %v1870
    %1927 = vmax.xlane.f32.xlu0 %v1926
    %v1928 = vpop.xlane.xlu0 %1927
    %v1929 = vmax.f32 %v1872, %v1874
    %1930 = vmax.xlane.f32.xlu0 %v1929
    %v1931 = vpop.xlane.xlu0 %1930
    %v1932 = vmax.f32 %v1878, %v1880
    %1933 = vmax.xlane.f32.xlu0 %v1932
    %v1934 = vpop.xlane.xlu0 %1933
    %v1935 = vmax.f32 %v1882, %v1884
    %1936 = vmax.xlane.f32.xlu0 %v1935
    %v1937 = vpop.xlane.xlu0 %1936
    %v1938 = vmax.f32 %v1888, %v1890
    %1939 = vmax.xlane.f32.xlu0 %v1938
    %v1940 = vpop.xlane.xlu0 %1939
    %v1941 = vmax.f32 %v1892, %v1894
    %1942 = vmax.xlane.f32.xlu0 %v1941
    %v1943 = vpop.xlane.xlu0 %1942
    %v1944 = vsub.f32 %v1818, %v1898
    %v1945 = vsub.f32 %v1820, %v1898
    %v1946 = vsub.f32 %v1822, %v1901
    %v1947 = vsub.f32 %v1824, %v1901
    %v1948 = vsub.f32 %v1828, %v1904
    %v1949 = vsub.f32 %v1830, %v1904
    %v1950 = vsub.f32 %v1832, %v1907
    %v1951 = vsub.f32 %v1834, %v1907
    %v1952 = vsub.f32 %v1838, %v1910
    %v1953 = vsub.f32 %v1840, %v1910
    %v1954 = vsub.f32 %v1842, %v1913
    %v1955 = vsub.f32 %v1844, %v1913
    %v1956 = vsub.f32 %v1848, %v1916
    %v1957 = vsub.f32 %v1850, %v1916
    %v1958 = vsub.f32 %v1852, %v1919
    %v1959 = vsub.f32 %v1854, %v1919
    %v1960 = vsub.f32 %v1858, %v1922
    %v1961 = vsub.f32 %v1860, %v1922
    %v1962 = vsub.f32 %v1862, %v1925
    %v1963 = vsub.f32 %v1864, %v1925
    %v1964 = vsub.f32 %v1868, %v1928
    %v1965 = vsub.f32 %v1870, %v1928
    %v1966 = vsub.f32 %v1872, %v1931
    %v1967 = vsub.f32 %v1874, %v1931
    %v1968 = vsub.f32 %v1878, %v1934
    %v1969 = vsub.f32 %v1880, %v1934
    %v1970 = vsub.f32 %v1882, %v1937
    %v1971 = vsub.f32 %v1884, %v1937
    %v1972 = vsub.f32 %v1888, %v1940
    %v1973 = vsub.f32 %v1890, %v1940
    %v1974 = vsub.f32 %v1892, %v1943
    %v1975 = vsub.f32 %v1894, %v1943
    %v1976 = vmul.f32 %v1944, 1.442695
    %v1977 = vpow.pop %v1976
    %v1978 = vmul.f32 %v1945, 1.442695
    %v1979 = vpow.pop %v1978
    %v1980 = vmul.f32 %v1946, 1.442695
    %v1981 = vpow.pop %v1980
    %v1982 = vmul.f32 %v1947, 1.442695
    %v1983 = vpow.pop %v1982
    %v1984 = vmul.f32 %v1948, 1.442695
    %v1985 = vpow.pop %v1984
    %v1986 = vmul.f32 %v1949, 1.442695
    %v1987 = vpow.pop %v1986
    %v1988 = vmul.f32 %v1950, 1.442695
    %v1989 = vpow.pop %v1988
    %v1990 = vmul.f32 %v1951, 1.442695
    %v1991 = vpow.pop %v1990
    %v1992 = vmul.f32 %v1952, 1.442695
    %v1993 = vpow.pop %v1992
    %v1994 = vmul.f32 %v1953, 1.442695
    %v1995 = vpow.pop %v1994
    %v1996 = vmul.f32 %v1954, 1.442695
    %v1997 = vpow.pop %v1996
    %v1998 = vmul.f32 %v1955, 1.442695
    %v1999 = vpow.pop %v1998
    %v2000 = vmul.f32 %v1956, 1.442695
    %v2001 = vpow.pop %v2000
    %v2002 = vmul.f32 %v1957, 1.442695
    %v2003 = vpow.pop %v2002
    %v2004 = vmul.f32 %v1958, 1.442695
    %v2005 = vpow.pop %v2004
    %v2006 = vmul.f32 %v1959, 1.442695
    %v2007 = vpow.pop %v2006
    %v2008 = vmul.f32 %v1960, 1.442695
    %v2009 = vpow.pop %v2008
    %v2010 = vmul.f32 %v1961, 1.442695
    %v2011 = vpow.pop %v2010
    %v2012 = vmul.f32 %v1962, 1.442695
    %v2013 = vpow.pop %v2012
    %v2014 = vmul.f32 %v1963, 1.442695
    %v2015 = vpow.pop %v2014
    %v2016 = vmul.f32 %v1964, 1.442695
    %v2017 = vpow.pop %v2016
    %v2018 = vmul.f32 %v1965, 1.442695
    %v2019 = vpow.pop %v2018
    %v2020 = vmul.f32 %v1966, 1.442695
    %v2021 = vpow.pop %v2020
    %v2022 = vmul.f32 %v1967, 1.442695
    %v2023 = vpow.pop %v2022
    %v2024 = vmul.f32 %v1968, 1.442695
    %v2025 = vpow.pop %v2024
    %v2026 = vmul.f32 %v1969, 1.442695
    %v2027 = vpow.pop %v2026
    %v2028 = vmul.f32 %v1970, 1.442695
    %v2029 = vpow.pop %v2028
    %v2030 = vmul.f32 %v1971, 1.442695
    %v2031 = vpow.pop %v2030
    %v2032 = vmul.f32 %v1972, 1.442695
    %v2033 = vpow.pop %v2032
    %v2034 = vmul.f32 %v1973, 1.442695
    %v2035 = vpow.pop %v2034
    %v2036 = vmul.f32 %v1974, 1.442695
    %v2037 = vpow.pop %v2036
    %v2038 = vmul.f32 %v1975, 1.442695
    %v2039 = vpow.pop %v2038
    %v2040 = vadd.f32 %v1977, %v1979
    %2041 = vadd.xlane.f32.xlu0 %v2040
    %v2042 = vpop.xlane.xlu0 %2041
    %v2043 = vadd.f32 %v1981, %v1983
    %2044 = vadd.xlane.f32.xlu0 %v2043
    %v2045 = vpop.xlane.xlu0 %2044
    %v2046 = vadd.f32 %v1985, %v1987
    %2047 = vadd.xlane.f32.xlu0 %v2046
    %v2048 = vpop.xlane.xlu0 %2047
    %v2049 = vadd.f32 %v1989, %v1991
    %2050 = vadd.xlane.f32.xlu0 %v2049
    %v2051 = vpop.xlane.xlu0 %2050
    %v2052 = vadd.f32 %v1993, %v1995
    %2053 = vadd.xlane.f32.xlu0 %v2052
    %v2054 = vpop.xlane.xlu0 %2053
    %v2055 = vadd.f32 %v1997, %v1999
    %2056 = vadd.xlane.f32.xlu0 %v2055
    %v2057 = vpop.xlane.xlu0 %2056
    %v2058 = vadd.f32 %v2001, %v2003
    %2059 = vadd.xlane.f32.xlu0 %v2058
    %v2060 = vpop.xlane.xlu0 %2059
    %v2061 = vadd.f32 %v2005, %v2007
    %2062 = vadd.xlane.f32.xlu0 %v2061
    %v2063 = vpop.xlane.xlu0 %2062
    %v2064 = vadd.f32 %v2009, %v2011
    %2065 = vadd.xlane.f32.xlu0 %v2064
    %v2066 = vpop.xlane.xlu0 %2065
    %v2067 = vadd.f32 %v2013, %v2015
    %2068 = vadd.xlane.f32.xlu0 %v2067
    %v2069 = vpop.xlane.xlu0 %2068
    %v2070 = vadd.f32 %v2017, %v2019
    %2071 = vadd.xlane.f32.xlu0 %v2070
    %v2072 = vpop.xlane.xlu0 %2071
    %v2073 = vadd.f32 %v2021, %v2023
    %2074 = vadd.xlane.f32.xlu0 %v2073
    %v2075 = vpop.xlane.xlu0 %2074
    %v2076 = vadd.f32 %v2025, %v2027
    %2077 = vadd.xlane.f32.xlu0 %v2076
    %v2078 = vpop.xlane.xlu0 %2077
    %v2079 = vadd.f32 %v2029, %v2031
    %2080 = vadd.xlane.f32.xlu0 %v2079
    %v2081 = vpop.xlane.xlu0 %2080
    %v2082 = vadd.f32 %v2033, %v2035
    %2083 = vadd.xlane.f32.xlu0 %v2082
    %v2084 = vpop.xlane.xlu0 %2083
    %v2085 = vadd.f32 %v2037, %v2039
    %2086 = vadd.xlane.f32.xlu0 %v2085
    %v2087 = vpop.xlane.xlu0 %2086
    %v2088 = vlog2.pop %v2042
    %v2089 = vmul.f32 %v2088, 0.6931472
    %v2090 = vlog2.pop %v2045
    %v2091 = vmul.f32 %v2090, 0.6931472
    %v2092 = vlog2.pop %v2048
    %v2093 = vmul.f32 %v2092, 0.6931472
    %v2094 = vlog2.pop %v2051
    %v2095 = vmul.f32 %v2094, 0.6931472
    %v2096 = vlog2.pop %v2054
    %v2097 = vmul.f32 %v2096, 0.6931472
    %v2098 = vlog2.pop %v2057
    %v2099 = vmul.f32 %v2098, 0.6931472
    %v2100 = vlog2.pop %v2060
    %v2101 = vmul.f32 %v2100, 0.6931472
    %v2102 = vlog2.pop %v2063
    %v2103 = vmul.f32 %v2102, 0.6931472
    %v2104 = vlog2.pop %v2066
    %v2105 = vmul.f32 %v2104, 0.6931472
    %v2106 = vlog2.pop %v2069
    %v2107 = vmul.f32 %v2106, 0.6931472
    %v2108 = vlog2.pop %v2072
    %v2109 = vmul.f32 %v2108, 0.6931472
    %v2110 = vlog2.pop %v2075
    %v2111 = vmul.f32 %v2110, 0.6931472
    %v2112 = vlog2.pop %v2078
    %v2113 = vmul.f32 %v2112, 0.6931472
    %v2114 = vlog2.pop %v2081
    %v2115 = vmul.f32 %v2114, 0.6931472
    %v2116 = vlog2.pop %v2084
    %v2117 = vmul.f32 %v2116, 0.6931472
    %v2118 = vlog2.pop %v2087
    %v2119 = vmul.f32 %v2118, 0.6931472
    %v2120 = vadd.f32 %v2089, %v1898
    %v2121 = vadd.f32 %v2091, %v1901
    %v2122 = vadd.f32 %v2093, %v1904
    %v2123 = vadd.f32 %v2095, %v1907
    %v2124 = vadd.f32 %v2097, %v1910
    %v2125 = vadd.f32 %v2099, %v1913
    %v2126 = vadd.f32 %v2101, %v1916
    %v2127 = vadd.f32 %v2103, %v1919
    %v2128 = vadd.f32 %v2105, %v1922
    %v2129 = vadd.f32 %v2107, %v1925
    %v2130 = vadd.f32 %v2109, %v1928
    %v2131 = vadd.f32 %v2111, %v1931
    %v2132 = vadd.f32 %v2113, %v1934
    %v2133 = vadd.f32 %v2115, %v1937
    %v2134 = vadd.f32 %v2117, %v1940
    %v2135 = vadd.f32 %v2119, %v1943
    %2136 = vset.pattern.permute.xlu0 1
    %2137 = vperm.xlu0 %2136, %v28
    %v2138 = vpop.permute.xlu0 %2137
    %2139 = vset.pattern.permute.xlu0 1
    %2140 = vperm.xlu0 %2139, %v29
    %v2141 = vpop.permute.xlu0 %2140
    %2142 = vset.pattern.permute.xlu0 1
    %2143 = vperm.xlu0 %2142, %v30
    %v2144 = vpop.permute.xlu0 %2143
    %2145 = vset.pattern.permute.xlu0 1
    %2146 = vperm.xlu0 %2145, %v31
    %v2147 = vpop.permute.xlu0 %2146
    %2148 = vset.pattern.permute.xlu0 1
    %2149 = vperm.xlu0 %2148, %v32
    %v2150 = vpop.permute.xlu0 %2149
    %2151 = vset.pattern.permute.xlu0 1
    %2152 = vperm.xlu0 %2151, %v33
    %v2153 = vpop.permute.xlu0 %2152
    %2154 = vset.pattern.permute.xlu0 1
    %2155 = vperm.xlu0 %2154, %v34
    %v2156 = vpop.permute.xlu0 %2155
    %2157 = vset.pattern.permute.xlu0 1
    %2158 = vperm.xlu0 %2157, %v35
    %v2159 = vpop.permute.xlu0 %2158
    %2160 = vset.pattern.permute.xlu0 1
    %2161 = vperm.xlu0 %2160, %v36
    %v2162 = vpop.permute.xlu0 %2161
    %2163 = vset.pattern.permute.xlu0 1
    %2164 = vperm.xlu0 %2163, %v37
    %v2165 = vpop.permute.xlu0 %2164
    %2166 = vset.pattern.permute.xlu0 1
    %2167 = vperm.xlu0 %2166, %v38
    %v2168 = vpop.permute.xlu0 %2167
    %2169 = vset.pattern.permute.xlu0 1
    %2170 = vperm.xlu0 %2169, %v39
    %v2171 = vpop.permute.xlu0 %2170
    %2172 = vset.pattern.permute.xlu0 1
    %2173 = vperm.xlu0 %2172, %v40
    %v2174 = vpop.permute.xlu0 %2173
    %2175 = vset.pattern.permute.xlu0 1
    %2176 = vperm.xlu0 %2175, %v41
    %v2177 = vpop.permute.xlu0 %2176
    %2178 = vset.pattern.permute.xlu0 1
    %2179 = vperm.xlu0 %2178, %v42
    %v2180 = vpop.permute.xlu0 %2179
    %2181 = vset.pattern.permute.xlu0 1
    %2182 = vperm.xlu0 %2181, %v43
    %v2183 = vpop.permute.xlu0 %2182
    %vm2184 = vcmp.eq.s32.totalorder %v45, %v2138
    %vm2185 = vcmp.eq.s32.totalorder %v46, %v2138
    %vm2186 = vcmp.eq.s32.totalorder %v45, %v2141
    %vm2187 = vcmp.eq.s32.totalorder %v46, %v2141
    %vm2188 = vcmp.eq.s32.totalorder %v45, %v2144
    %vm2189 = vcmp.eq.s32.totalorder %v46, %v2144
    %vm2190 = vcmp.eq.s32.totalorder %v45, %v2147
    %vm2191 = vcmp.eq.s32.totalorder %v46, %v2147
    %vm2192 = vcmp.eq.s32.totalorder %v45, %v2150
    %vm2193 = vcmp.eq.s32.totalorder %v46, %v2150
    %vm2194 = vcmp.eq.s32.totalorder %v45, %v2153
    %vm2195 = vcmp.eq.s32.totalorder %v46, %v2153
    %vm2196 = vcmp.eq.s32.totalorder %v45, %v2156
    %vm2197 = vcmp.eq.s32.totalorder %v46, %v2156
    %vm2198 = vcmp.eq.s32.totalorder %v45, %v2159
    %vm2199 = vcmp.eq.s32.totalorder %v46, %v2159
    %vm2200 = vcmp.eq.s32.totalorder %v45, %v2162
    %vm2201 = vcmp.eq.s32.totalorder %v46, %v2162
    %vm2202 = vcmp.eq.s32.totalorder %v45, %v2165
    %vm2203 = vcmp.eq.s32.totalorder %v46, %v2165
    %vm2204 = vcmp.eq.s32.totalorder %v45, %v2168
    %vm2205 = vcmp.eq.s32.totalorder %v46, %v2168
    %vm2206 = vcmp.eq.s32.totalorder %v45, %v2171
    %vm2207 = vcmp.eq.s32.totalorder %v46, %v2171
    %vm2208 = vcmp.eq.s32.totalorder %v45, %v2174
    %vm2209 = vcmp.eq.s32.totalorder %v46, %v2174
    %vm2210 = vcmp.eq.s32.totalorder %v45, %v2177
    %vm2211 = vcmp.eq.s32.totalorder %v46, %v2177
    %vm2212 = vcmp.eq.s32.totalorder %v45, %v2180
    %vm2213 = vcmp.eq.s32.totalorder %v46, %v2180
    %vm2214 = vcmp.eq.s32.totalorder %v45, %v2183
    %vm2215 = vcmp.eq.s32.totalorder %v46, %v2183
    %v2216 = vsel %vm2184, %v1818, 0.0
    %v2217 = vsel %vm2185, %v1820, 0.0
    %v2218 = vsel %vm2186, %v1822, 0.0
    %v2219 = vsel %vm2187, %v1824, 0.0
    %v2220 = vsel %vm2188, %v1828, 0.0
    %v2221 = vsel %vm2189, %v1830, 0.0
    %v2222 = vsel %vm2190, %v1832, 0.0
    %v2223 = vsel %vm2191, %v1834, 0.0
    %v2224 = vsel %vm2192, %v1838, 0.0
    %v2225 = vsel %vm2193, %v1840, 0.0
    %v2226 = vsel %vm2194, %v1842, 0.0
    %v2227 = vsel %vm2195, %v1844, 0.0
    %v2228 = vsel %vm2196, %v1848, 0.0
    %v2229 = vsel %vm2197, %v1850, 0.0
    %v2230 = vsel %vm2198, %v1852, 0.0
    %v2231 = vsel %vm2199, %v1854, 0.0
    %v2232 = vsel %vm2200, %v1858, 0.0
    %v2233 = vsel %vm2201, %v1860, 0.0
    %v2234 = vsel %vm2202, %v1862, 0.0
    %v2235 = vsel %vm2203, %v1864, 0.0
    %v2236 = vsel %vm2204, %v1868, 0.0
    %v2237 = vsel %vm2205, %v1870, 0.0
    %v2238 = vsel %vm2206, %v1872, 0.0
    %v2239 = vsel %vm2207, %v1874, 0.0
    %v2240 = vsel %vm2208, %v1878, 0.0
    %v2241 = vsel %vm2209, %v1880, 0.0
    %v2242 = vsel %vm2210, %v1882, 0.0
    %v2243 = vsel %vm2211, %v1884, 0.0
    %v2244 = vsel %vm2212, %v1888, 0.0
    %v2245 = vsel %vm2213, %v1890, 0.0
    %v2246 = vsel %vm2214, %v1892, 0.0
    %v2247 = vsel %vm2215, %v1894, 0.0
    %v2248 = vadd.f32 %v2216, %v2217
    %2249 = vadd.xlane.f32.xlu0 %v2248
    %v2250 = vpop.xlane.xlu0 %2249
    %v2251 = vadd.f32 %v2218, %v2219
    %2252 = vadd.xlane.f32.xlu0 %v2251
    %v2253 = vpop.xlane.xlu0 %2252
    %v2254 = vadd.f32 %v2220, %v2221
    %2255 = vadd.xlane.f32.xlu0 %v2254
    %v2256 = vpop.xlane.xlu0 %2255
    %v2257 = vadd.f32 %v2222, %v2223
    %2258 = vadd.xlane.f32.xlu0 %v2257
    %v2259 = vpop.xlane.xlu0 %2258
    %v2260 = vadd.f32 %v2224, %v2225
    %2261 = vadd.xlane.f32.xlu0 %v2260
    %v2262 = vpop.xlane.xlu0 %2261
    %v2263 = vadd.f32 %v2226, %v2227
    %2264 = vadd.xlane.f32.xlu0 %v2263
    %v2265 = vpop.xlane.xlu0 %2264
    %v2266 = vadd.f32 %v2228, %v2229
    %2267 = vadd.xlane.f32.xlu0 %v2266
    %v2268 = vpop.xlane.xlu0 %2267
    %v2269 = vadd.f32 %v2230, %v2231
    %2270 = vadd.xlane.f32.xlu0 %v2269
    %v2271 = vpop.xlane.xlu0 %2270
    %v2272 = vadd.f32 %v2232, %v2233
    %2273 = vadd.xlane.f32.xlu0 %v2272
    %v2274 = vpop.xlane.xlu0 %2273
    %v2275 = vadd.f32 %v2234, %v2235
    %2276 = vadd.xlane.f32.xlu0 %v2275
    %v2277 = vpop.xlane.xlu0 %2276
    %v2278 = vadd.f32 %v2236, %v2237
    %2279 = vadd.xlane.f32.xlu0 %v2278
    %v2280 = vpop.xlane.xlu0 %2279
    %v2281 = vadd.f32 %v2238, %v2239
    %2282 = vadd.xlane.f32.xlu0 %v2281
    %v2283 = vpop.xlane.xlu0 %2282
    %v2284 = vadd.f32 %v2240, %v2241
    %2285 = vadd.xlane.f32.xlu0 %v2284
    %v2286 = vpop.xlane.xlu0 %2285
    %v2287 = vadd.f32 %v2242, %v2243
    %2288 = vadd.xlane.f32.xlu0 %v2287
    %v2289 = vpop.xlane.xlu0 %2288
    %v2290 = vadd.f32 %v2244, %v2245
    %2291 = vadd.xlane.f32.xlu0 %v2290
    %v2292 = vpop.xlane.xlu0 %2291
    %v2293 = vadd.f32 %v2246, %v2247
    %2294 = vadd.xlane.f32.xlu0 %v2293
    %v2295 = vpop.xlane.xlu0 %2294
    %vm2296 = vcmp.ne.s32.totalorder %v28, 4294967196
    %vm2297 = vcmp.ne.s32.totalorder %v29, 4294967196
    %vm2298 = vcmp.ne.s32.totalorder %v30, 4294967196
    %vm2299 = vcmp.ne.s32.totalorder %v31, 4294967196
    %vm2300 = vcmp.ne.s32.totalorder %v32, 4294967196
    %vm2301 = vcmp.ne.s32.totalorder %v33, 4294967196
    %vm2302 = vcmp.ne.s32.totalorder %v34, 4294967196
    %vm2303 = vcmp.ne.s32.totalorder %v35, 4294967196
    %vm2304 = vcmp.ne.s32.totalorder %v36, 4294967196
    %vm2305 = vcmp.ne.s32.totalorder %v37, 4294967196
    %vm2306 = vcmp.ne.s32.totalorder %v38, 4294967196
    %vm2307 = vcmp.ne.s32.totalorder %v39, 4294967196
    %vm2308 = vcmp.ne.s32.totalorder %v40, 4294967196
    %vm2309 = vcmp.ne.s32.totalorder %v41, 4294967196
    %vm2310 = vcmp.ne.s32.totalorder %v42, 4294967196
    %vm2311 = vcmp.ne.s32.totalorder %v43, 4294967196
    %v2312 = vsel %vm2296, 1, 0
    %v2313 = vsel %vm2297, 1, 0
    %v2314 = vsel %vm2298, 1, 0
    %v2315 = vsel %vm2299, 1, 0
    %v2316 = vsel %vm2300, 1, 0
    %v2317 = vsel %vm2301, 1, 0
    %v2318 = vsel %vm2302, 1, 0
    %v2319 = vsel %vm2303, 1, 0
    %v2320 = vsel %vm2304, 1, 0
    %v2321 = vsel %vm2305, 1, 0
    %v2322 = vsel %vm2306, 1, 0
    %v2323 = vsel %vm2307, 1, 0
    %v2324 = vsel %vm2308, 1, 0
    %v2325 = vsel %vm2309, 1, 0
    %v2326 = vsel %vm2310, 1, 0
    %v2327 = vsel %vm2311, 1, 0
    %v2328 = vcvt.s32.f32 %v2312
    %v2329 = vcvt.s32.f32 %v2313
    %v2330 = vcvt.s32.f32 %v2314
    %v2331 = vcvt.s32.f32 %v2315
    %v2332 = vcvt.s32.f32 %v2316
    %v2333 = vcvt.s32.f32 %v2317
    %v2334 = vcvt.s32.f32 %v2318
    %v2335 = vcvt.s32.f32 %v2319
    %v2336 = vcvt.s32.f32 %v2320
    %v2337 = vcvt.s32.f32 %v2321
    %v2338 = vcvt.s32.f32 %v2322
    %v2339 = vcvt.s32.f32 %v2323
    %v2340 = vcvt.s32.f32 %v2324
    %v2341 = vcvt.s32.f32 %v2325
    %v2342 = vcvt.s32.f32 %v2326
    %v2343 = vcvt.s32.f32 %v2327
    %v2344 = vsub.f32 %v2120, %v2250
    %v2345 = vsub.f32 %v2121, %v2253
    %v2346 = vsub.f32 %v2122, %v2256
    %v2347 = vsub.f32 %v2123, %v2259
    %v2348 = vsub.f32 %v2124, %v2262
    %v2349 = vsub.f32 %v2125, %v2265
    %v2350 = vsub.f32 %v2126, %v2268
    %v2351 = vsub.f32 %v2127, %v2271
    %v2352 = vsub.f32 %v2128, %v2274
    %v2353 = vsub.f32 %v2129, %v2277
    %v2354 = vsub.f32 %v2130, %v2280
    %v2355 = vsub.f32 %v2131, %v2283
    %v2356 = vsub.f32 %v2132, %v2286
    %v2357 = vsub.f32 %v2133, %v2289
    %v2358 = vsub.f32 %v2134, %v2292
    %v2359 = vsub.f32 %v2135, %v2295
    %v2360 = vmul.f32 %v2344, %v2328
    %v2361 = vmul.f32 %v2345, %v2329
    %v2362 = vmul.f32 %v2346, %v2330
    %v2363 = vmul.f32 %v2347, %v2331
    %v2364 = vmul.f32 %v2348, %v2332
    %v2365 = vmul.f32 %v2349, %v2333
    %v2366 = vmul.f32 %v2350, %v2334
    %v2367 = vmul.f32 %v2351, %v2335
    %v2368 = vmul.f32 %v2352, %v2336
    %v2369 = vmul.f32 %v2353, %v2337
    %v2370 = vmul.f32 %v2354, %v2338
    %v2371 = vmul.f32 %v2355, %v2339
    %v2372 = vmul.f32 %v2356, %v2340
    %v2373 = vmul.f32 %v2357, %v2341
    %v2374 = vmul.f32 %v2358, %v2342
    %v2375 = vmul.f32 %v2359, %v2343
    %2384 = vrot.lane.b32.xlu0 %v2360, 127
    %v2385 = vpop.permute.xlu0 %2384
    %2386 = vrot.lane.b32.xlu0 %v2361, 127
    %v2387 = vpop.permute.xlu0 %2386
    %2388 = vrot.lane.b32.xlu0 %v2362, 127
    %v2389 = vpop.permute.xlu0 %2388
    %2390 = vrot.lane.b32.xlu0 %v2363, 127
    %v2391 = vpop.permute.xlu0 %2390
    %2392 = vrot.lane.b32.xlu0 %v2364, 127
    %v2393 = vpop.permute.xlu0 %2392
    %2394 = vrot.lane.b32.xlu0 %v2365, 127
    %v2395 = vpop.permute.xlu0 %2394
    %2396 = vrot.lane.b32.xlu0 %v2366, 127
    %v2397 = vpop.permute.xlu0 %2396
    %2398 = vrot.lane.b32.xlu0 %v2367, 127
    %v2399 = vpop.permute.xlu0 %2398
    %vm2408 = vcmask 7168
    %v2409 = vsel %vm2408, %v2385, 0.0
    %v2410 = vsel %vm2408, %v2387, 0.0
    %v2411 = vadd.f32 %v2409, %v2410
    %v2412 = vsel %vm2408, %v2389, 0.0
    %v2413 = vadd.f32 %v2411, %v2412
    %v2414 = vsel %vm2408, %v2391, 0.0
    %v2415 = vadd.f32 %v2413, %v2414
    %v2416 = vsel %vm2408, %v2393, 0.0
    %v2417 = vadd.f32 %v2415, %v2416
    %v2418 = vsel %vm2408, %v2395, 0.0
    %v2419 = vadd.f32 %v2417, %v2418
    %v2420 = vsel %vm2408, %v2397, 0.0
    %v2421 = vadd.f32 %v2419, %v2420
    %v2422 = vsel %vm2408, %v2399, 0.0
    %v2423 = vadd.f32 %v2421, %v2422
    %2424 = vadd.xlane.f32.xlu0 %v2423
    %v2425 = vpop.xlane.xlu0 %2424
    %v2426 = vrot.slane %v2425, 4
    %v2427 = vadd.f32 %v2425, %v2426
    %v2428 = vrot.slane %v2427, 2
    %v2429 = vadd.f32 %v2427, %v2428
    %v2430 = vrot.slane %v2429, 1
    %v2431 = vadd.f32 %v2429, %v2430
    %s2432 = vtos %v2431
    %2441 = vrot.lane.b32.xlu0 %v2328, 127
    %v2442 = vpop.permute.xlu0 %2441
    %2443 = vrot.lane.b32.xlu0 %v2329, 127
    %v2444 = vpop.permute.xlu0 %2443
    %2445 = vrot.lane.b32.xlu0 %v2330, 127
    %v2446 = vpop.permute.xlu0 %2445
    %2447 = vrot.lane.b32.xlu0 %v2331, 127
    %v2448 = vpop.permute.xlu0 %2447
    %2449 = vrot.lane.b32.xlu0 %v2332, 127
    %v2450 = vpop.permute.xlu0 %2449
    %2451 = vrot.lane.b32.xlu0 %v2333, 127
    %v2452 = vpop.permute.xlu0 %2451
    %2453 = vrot.lane.b32.xlu0 %v2334, 127
    %v2454 = vpop.permute.xlu0 %2453
    %2455 = vrot.lane.b32.xlu0 %v2335, 127
    %v2456 = vpop.permute.xlu0 %2455
    %v2465 = vsel %vm2408, %v2442, 0.0
    %v2466 = vsel %vm2408, %v2444, 0.0
    %v2467 = vadd.f32 %v2465, %v2466
    %v2468 = vsel %vm2408, %v2446, 0.0
    %v2469 = vadd.f32 %v2467, %v2468
    %v2470 = vsel %vm2408, %v2448, 0.0
    %v2471 = vadd.f32 %v2469, %v2470
    %v2472 = vsel %vm2408, %v2450, 0.0
    %v2473 = vadd.f32 %v2471, %v2472
    %v2474 = vsel %vm2408, %v2452, 0.0
    %v2475 = vadd.f32 %v2473, %v2474
    %v2476 = vsel %vm2408, %v2454, 0.0
    %v2477 = vadd.f32 %v2475, %v2476
    %v2478 = vsel %vm2408, %v2456, 0.0
    %v2479 = vadd.f32 %v2477, %v2478
    %2480 = vadd.xlane.f32.xlu0 %v2479
    %v2481 = vpop.xlane.xlu0 %2480
    %v2482 = vrot.slane %v2481, 4
    %v2483 = vadd.f32 %v2481, %v2482
    %v2484 = vrot.slane %v2483, 2
    %v2485 = vadd.f32 %v2483, %v2484
    %v2486 = vrot.slane %v2485, 1
    %v2487 = vadd.f32 %v2485, %v2486
    %s2488 = vtos %v2487
    %s2489 = smax.f32 %s2488, 1.0
    %v2490 = vstv %s2489
    %v2491 = vrcp.pop %v2490
    %s2492 = vtos %v2491
    %s2493 = smul.f32 %s2432, %s2492
    %2502 = vrot.lane.b32.xlu0 %v2368, 127
    %v2503 = vpop.permute.xlu0 %2502
    %2504 = vrot.lane.b32.xlu0 %v2369, 127
    %v2505 = vpop.permute.xlu0 %2504
    %2506 = vrot.lane.b32.xlu0 %v2370, 127
    %v2507 = vpop.permute.xlu0 %2506
    %2508 = vrot.lane.b32.xlu0 %v2371, 127
    %v2509 = vpop.permute.xlu0 %2508
    %2510 = vrot.lane.b32.xlu0 %v2372, 127
    %v2511 = vpop.permute.xlu0 %2510
    %2512 = vrot.lane.b32.xlu0 %v2373, 127
    %v2513 = vpop.permute.xlu0 %2512
    %2514 = vrot.lane.b32.xlu0 %v2374, 127
    %v2515 = vpop.permute.xlu0 %2514
    %2516 = vrot.lane.b32.xlu0 %v2375, 127
    %v2517 = vpop.permute.xlu0 %2516
    %v2526 = vsel %vm2408, %v2503, 0.0
    %v2527 = vsel %vm2408, %v2505, 0.0
    %v2528 = vadd.f32 %v2526, %v2527
    %v2529 = vsel %vm2408, %v2507, 0.0
    %v2530 = vadd.f32 %v2528, %v2529
    %v2531 = vsel %vm2408, %v2509, 0.0
    %v2532 = vadd.f32 %v2530, %v2531
    %v2533 = vsel %vm2408, %v2511, 0.0
    %v2534 = vadd.f32 %v2532, %v2533
    %v2535 = vsel %vm2408, %v2513, 0.0
    %v2536 = vadd.f32 %v2534, %v2535
    %v2537 = vsel %vm2408, %v2515, 0.0
    %v2538 = vadd.f32 %v2536, %v2537
    %v2539 = vsel %vm2408, %v2517, 0.0
    %v2540 = vadd.f32 %v2538, %v2539
    %2541 = vadd.xlane.f32.xlu0 %v2540
    %v2542 = vpop.xlane.xlu0 %2541
    %v2543 = vrot.slane %v2542, 4
    %v2544 = vadd.f32 %v2542, %v2543
    %v2545 = vrot.slane %v2544, 2
    %v2546 = vadd.f32 %v2544, %v2545
    %v2547 = vrot.slane %v2546, 1
    %v2548 = vadd.f32 %v2546, %v2547
    %s2549 = vtos %v2548
    %2558 = vrot.lane.b32.xlu0 %v2336, 127
    %v2559 = vpop.permute.xlu0 %2558
    %2560 = vrot.lane.b32.xlu0 %v2337, 127
    %v2561 = vpop.permute.xlu0 %2560
    %2562 = vrot.lane.b32.xlu0 %v2338, 127
    %v2563 = vpop.permute.xlu0 %2562
    %2564 = vrot.lane.b32.xlu0 %v2339, 127
    %v2565 = vpop.permute.xlu0 %2564
    %2566 = vrot.lane.b32.xlu0 %v2340, 127
    %v2567 = vpop.permute.xlu0 %2566
    %2568 = vrot.lane.b32.xlu0 %v2341, 127
    %v2569 = vpop.permute.xlu0 %2568
    %2570 = vrot.lane.b32.xlu0 %v2342, 127
    %v2571 = vpop.permute.xlu0 %2570
    %2572 = vrot.lane.b32.xlu0 %v2343, 127
    %v2573 = vpop.permute.xlu0 %2572
    %v2582 = vsel %vm2408, %v2559, 0.0
    %v2583 = vsel %vm2408, %v2561, 0.0
    %v2584 = vadd.f32 %v2582, %v2583
    %v2585 = vsel %vm2408, %v2563, 0.0
    %v2586 = vadd.f32 %v2584, %v2585
    %v2587 = vsel %vm2408, %v2565, 0.0
    %v2588 = vadd.f32 %v2586, %v2587
    %v2589 = vsel %vm2408, %v2567, 0.0
    %v2590 = vadd.f32 %v2588, %v2589
    %v2591 = vsel %vm2408, %v2569, 0.0
    %v2592 = vadd.f32 %v2590, %v2591
    %v2593 = vsel %vm2408, %v2571, 0.0
    %v2594 = vadd.f32 %v2592, %v2593
    %v2595 = vsel %vm2408, %v2573, 0.0
    %v2596 = vadd.f32 %v2594, %v2595
    %2597 = vadd.xlane.f32.xlu0 %v2596
    %v2598 = vpop.xlane.xlu0 %2597
    %v2599 = vrot.slane %v2598, 4
    %v2600 = vadd.f32 %v2598, %v2599
    %v2601 = vrot.slane %v2600, 2
    %v2602 = vadd.f32 %v2600, %v2601
    %v2603 = vrot.slane %v2602, 1
    %v2604 = vadd.f32 %v2602, %v2603
    %s2605 = vtos %v2604
    %s2606 = smax.f32 %s2605, 1.0
    %v2607 = vstv %s2606
    %v2608 = vrcp.pop %v2607
    %s2609 = vtos %v2608
    %s2610 = smul.f32 %s2549, %s2609
    %s2611 = sadd.f32 %s2493, %s2610
    %s2612 = scalar_lea.smem [#allocation2], 0
    %2613 = sst [smem:[%s2612]] %s2611
    %v2614 = vld [vmem:[%s1] sm:$0xff]
    %v2615 = vld [vmem:[%s1 + $0x8] sm:$0xff]
    %2616 = vset.pattern.permute.xlu0 0
    %2617 = vperm.xlu0 %2616, %v2614
    %v2618 = vpop.permute.xlu0 %2617
    %2619 = vset.pattern.permute.xlu0 0
    %2620 = vperm.xlu0 %2619, %v2615
    %v2621 = vpop.permute.xlu0 %2620
    %vm2622 = vcmp.ge.s32.totalorder %v45, %v2618
    %vm2623 = vcmp.ge.s32.totalorder %v45, %v2621
    %2624 = vset.pattern.permute.xlu0 1
    %2625 = vperm.xlu0 %2624, %v2614
    %v2626 = vpop.permute.xlu0 %2625
    %2627 = vset.pattern.permute.xlu0 1
    %2628 = vperm.xlu0 %2627, %v2615
    %v2629 = vpop.permute.xlu0 %2628
    %vm2630 = vcmp.lt.s32.totalorder %v45, %v2626
    %vm2631 = vcmp.lt.s32.totalorder %v45, %v2629
    %vm2632 = vmand %vm2622, %vm2630
    %vm2633 = vmand %vm2623, %vm2631
    %v2634 = vsel %vm2632, 1, 0
    %v2635 = vsel %vm2633, 1, 0
    %v2636 = vcvt.s32.f32 %v2634
    %v2637 = vcvt.s32.f32 %v2635
    %2638 = vadd.xlane.f32.xlu0 %v2636
    %v2639 = vpop.xlane.xlu0 %2638
    %2640 = vadd.xlane.f32.xlu0 %v2637
    %v2641 = vpop.xlane.xlu0 %2640
    %v2642 = vmax.f32 %v2639, 1.0
    %v2643 = vmax.f32 %v2641, 1.0
    %v2644 = vrcp.pop %v2642
    %v2645 = vmul.f32 %v2636, %v2644
    %v2646 = vrcp.pop %v2643
    %v2647 = vmul.f32 %v2637, %v2646
    %2648 = vmatprep.subr.mxu0 0.0
    %2649 = vmatpush1.msra.mxu0 %v1668
    %2650 = vmatprep.subr.mxu0 0.0
    %2651 = vmatpush1.msra.mxu0 %v1669
    %2652 = vmatprep.subr.mxu0 0.0
    %2653 = vmatpush1.msra.mxu0 %v1670
    %2654 = vmatprep.subr.mxu0 0.0
    %2655 = vmatpush1.msra.mxu0 %v1671
    %2656 = vmatprep.subr.mxu0 0.0
    %2657 = vmatpush1.msra.mxu0 %v1672
    %2658 = vmatprep.subr.mxu0 0.0
    %2659 = vmatpush1.msra.mxu0 %v1673
    %2660 = vmatprep.subr.mxu0 0.0
    %2661 = vmatpush1.msra.mxu0 %v1674
    %2662 = vmatprep.subr.mxu0 0.0
    %2663 = vmatpush1.msra.mxu0 %v1675
    %2664 = vmatprep.subr.mxu0 0.0
    %2665 = vmatpush1.msra.mxu0 %v1676
    %2666 = vmatprep.subr.mxu0 0.0
    %2667 = vmatpush1.msra.mxu0 %v1677
    %2668 = vmatprep.subr.mxu0 0.0
    %2669 = vmatpush1.msra.mxu0 %v1678
    %2670 = vmatprep.subr.mxu0 0.0
    %2671 = vmatpush1.msra.mxu0 %v1679
    %2672 = vmatprep.subr.mxu0 0.0
    %2673 = vmatpush1.msra.mxu0 %v1680
    %2674 = vmatprep.subr.mxu0 0.0
    %2675 = vmatpush1.msra.mxu0 %v1681
    %2676 = vmatprep.subr.mxu0 0.0
    %2677 = vmatpush1.msra.mxu0 %v1682
    %2678 = vmatprep.subr.mxu0 0.0
    %2679 = vmatpush1.msra.mxu0 %v1683
    %2680 = vmatprep.subr.mxu0 0.0
    %2681 = vmatpush1.msra.mxu0 0.0
    %2682 = vmatprep.subr.mxu0 0.0
    %2683 = vmatpush1.msra.mxu0 0.0
    %2684 = vmatprep.subr.mxu0 0.0
    %2685 = vmatpush1.msra.mxu0 0.0
    %2686 = vmatprep.subr.mxu0 0.0
    %2687 = vmatpush1.msra.mxu0 0.0
    %2688 = vmatprep.subr.mxu0 0.0
    %2689 = vmatpush1.msra.mxu0 0.0
    %2690 = vmatprep.subr.mxu0 0.0
    %2691 = vmatpush1.msra.mxu0 0.0
    %2692 = vmatprep.subr.mxu0 0.0
    %2693 = vmatpush1.msra.mxu0 0.0
    %2694 = vmatprep.subr.mxu0 0.0
    %2695 = vmatpush1.msra.mxu0 0.0
    %2696 = vmatprep.subr.mxu0 0.0
    %2697 = vmatpush1.msra.mxu0 0.0
    %2698 = vmatprep.subr.mxu0 0.0
    %2699 = vmatpush1.msra.mxu0 0.0
    %2700 = vmatprep.subr.mxu0 0.0
    %2701 = vmatpush1.msra.mxu0 0.0
    %2702 = vmatprep.subr.mxu0 0.0
    %2703 = vmatpush1.msra.mxu0 0.0
    %2704 = vmatprep.subr.mxu0 0.0
    %2705 = vmatpush1.msra.mxu0 0.0
    %2706 = vmatprep.subr.mxu0 0.0
    %2707 = vmatpush1.msra.mxu0 0.0
    %2708 = vmatprep.subr.mxu0 0.0
    %2709 = vmatpush1.msra.mxu0 0.0
    %2710 = vmatprep.subr.mxu0 0.0
    %2711 = vmatpush1.msra.mxu0 0.0
    %2712 = vmatprep.mubr.f32.mxu0 0.0
    %2713 = vmatmul.mubr.f32.gmra.mrb[0].mxu0 %v2645
    %v2714 = vpop.f32.mrb[0].mxu0
    %v2715 = vadd.f32 0.0, %v2714
    %v2716 = vpop.f32.mrb[0].mxu0
    %2717 = vmatprep.mubr.f32.mxu0 0.0
    %2718 = vmatmul.mubr.f32.gmra.mrb[0].mxu0 %v2647
    %v2719 = vpop.f32.mrb[0].mxu0
    %v2720 = vadd.f32 0.0, %v2719
    %v2721 = vpop.f32.mrb[0].mxu0
    %2722 = vdwg.mxu0
    %v2723 = vmul.f32 %v2715, %v2720
    %v2725 = vrot.slane %v2723, 4
    %v2727 = vadd.f32 %v2723, %v2725
    %vm2728 = vcmask 1043456
    %v2729 = vsel %vm2728, %v2727, 0.0
    %2730 = vadd.xlane.f32.xlu0 %v2729
    %v2731 = vpop.xlane.xlu0 %2730
    %v2732 = vld [vmem:[%s2] sm:$0xf]
    %v2733 = vmax.f32 %v2731, 0.0
    %v2734 = vmul.f32 %v2731, %v2732
    %v2735 = vsub.f32 %v2733, %v2734
    %v2736 = vand.u32 2147483647, %v2731
    %v2737 = vsub.f32 0.0, %v2736
    %v2738 = vmul.f32 %v2737, 1.442695
    %v2739 = vpow.pop %v2738
    %v2740 = vadd.f32 %v2739, 1.0
    %v2741 = vlog2.pop %v2740
    %v2742 = vmul.f32 %v2741, 0.6931472
    %v2743 = vadd.f32 %v2735, %v2742
    %vm2744 = vcmask 3072
    %v2745 = vsel %vm2744, %v2743, 0.0
    %2746 = vadd.xlane.f32.xlu0 %v2745
    %v2747 = vpop.xlane.xlu0 %2746
    %v2748 = vrot.slane %v2747, 4
    %v2749 = vadd.f32 %v2747, %v2748
    %v2750 = vrot.slane %v2749, 2
    %v2751 = vadd.f32 %v2749, %v2750
    %v2752 = vrot.slane %v2751, 1
    %v2753 = vadd.f32 %v2751, %v2752
    %s2754 = vtos %v2753
    %v2755 = vrcp.pop 4.0
    %s2756 = vtos %v2755
    %s2757 = smul.f32 %s2754, %s2756
    %s2758 = scalar_lea.smem [#allocation2], 1
    %2759 = sst [smem:[%s2758]] %s2757
    // Predicated region
    $region30: #{mtb_forward.1} parent=1 // pred_check
      _
    $region31: #{mtb_forward.1} parent=1 // pred_check_branch
      %2761 = sbr.rel (0) target = $region33
    $region32: #{mtb_forward.1} parent=1 // pred_region
      %s2763 = ssub.s32 16, 16
      %2764 = vsyncadd [#allocation3], %s2763
      %s2766 = sshll.u32 %s7, 4
      %s2767 = int_to_ptr.vmem [resolvable:$true] %s2766
      %2769 = dma.smem_to_vmem [#allocation2], 16, %s2767, [#allocation3]
    $region33: #{mtb_forward.1} parent=1 // pred_fallthru
      _
    // Predicated region
    $region34: #{mtb_forward.1} parent=1 // pred_check
      _
    $region35: #{mtb_forward.1} parent=1 // pred_check_branch
      %2771 = sbr.rel (0) target = $region37
    $region36: #{mtb_forward.1} parent=1 // pred_region
      %2772 = dma.done [#allocation3], 16
    $region37: #{mtb_forward.1} parent=1 // pred_fallthru
      _
    %2773 = sfence
    %2774 = vsyncpa [#allocation3], 1

</llo_original>
